<compile_context>
chip_gen: v7x
topology: tpu7x:2x2x1
jax: 0.10.0
libtpu: 0.0.40
codegen_flags: <defaults>
</compile_context>

<pallas_src>
import jax
import jax.numpy as jnp
from jax.experimental import pallas as pl
from jax.experimental.pallas import tpu as pltpu

# ---- small, deterministic BERT config (mirrors BertConfig fields we need) ----
B, S = 2, 8                  # batch, sequence length
HIDDEN = 32                  # hidden_size
N_HEADS = 2                  # num_attention_heads
D_HEAD = HIDDEN // N_HEADS
N_LAYERS = 2                 # num_hidden_layers
INTERMEDIATE = 64            # intermediate_size
VOCAB = 100                  # vocab_size
TYPE_VOCAB = 2               # type_vocab_size
MAX_POS = 2048               # max_position_embeddings (as in the module)
FEATURE_SIZE = 16            # feature_size
NUM_CLASSES = 5              # num_classes (post_features / output_layer unused in forward)
LN_EPS = 1e-12

# Packed-parameter layout constants.
VEC_W = 3 * HIDDEN                           # 96 (widest packed vector = fused QKV bias)
VEC_ROWS_PER_LAYER = 8                       # bqkv, bo, ln1_g, ln1_b, bi, bf, ln2_g, ln2_b
VEC_GLOBAL = N_LAYERS * VEC_ROWS_PER_LAYER   # offset of the global rows
VEC_ROWS = VEC_GLOBAL + 4                    # + emb_ln_g, emb_ln_b, pool_b, feat_b
WA_COLS = 3 * HIDDEN + HIDDEN + INTERMEDIATE  # 192: [wqkv | wo | wi]


# ----------------------------- fused Pallas kernel -----------------------------

def _mm(a, b):
    """MXU matmul: bf16 operands, f32 accumulation."""
    return jnp.dot(a.astype(jnp.bfloat16), b.astype(jnp.bfloat16),
                   preferred_element_type=jnp.float32)


def _mm_nt(a, b):
    """a @ b.T without materializing the transpose (contract last dims of both)."""
    return jax.lax.dot_general(
        a.astype(jnp.bfloat16), b.astype(jnp.bfloat16),
        (((1,), (1,)), ((), ())), preferred_element_type=jnp.float32)


def _layernorm(x, g, b):
    mu = jnp.mean(x, axis=-1, keepdims=True)
    var = jnp.mean(jnp.square(x - mu), axis=-1, keepdims=True)
    return (x - mu) * jax.lax.rsqrt(var + LN_EPS) * g + b


def _encoder_kernel(x_ref, key_ref, vec_ref, wa_ref, wf_ref, wh_ref, out_ref):
    # One grid step == one batch element: an (S, H) token tile end to end.
    vecs = vec_ref[...]                                           # (VEC_ROWS, 96) f32
    emb_g = vecs[VEC_GLOBAL + 0:VEC_GLOBAL + 1, :HIDDEN]
    emb_b = vecs[VEC_GLOBAL + 1:VEC_GLOBAL + 2, :HIDDEN]
    pool_b = vecs[VEC_GLOBAL + 2:VEC_GLOBAL + 3, :HIDDEN]
    feat_b = vecs[VEC_GLOBAL + 3:VEC_GLOBAL + 4, :FEATURE_SIZE]

    x = _layernorm(x_ref[0], emb_g, emb_b)                        # (S, H) embedding LN
    key_add = key_ref[0]                                          # (1, S) additive key mask

    for l in range(N_LAYERS):                 # static unroll; weights resident in VMEM
        base = l * VEC_ROWS_PER_LAYER
        bqkv = vecs[base + 0:base + 1, :]                         # (1, 3H); Q part pre-scaled
        bo = vecs[base + 1:base + 2, :HIDDEN]
        ln1g = vecs[base + 2:base + 3, :HIDDEN]
        ln1b = vecs[base + 3:base + 4, :HIDDEN]
        bi = vecs[base + 4:base + 5, :INTERMEDIATE]
        bff = vecs[base + 5:base + 6, :HIDDEN]
        ln2g = vecs[base + 6:base + 7, :HIDDEN]
        ln2b = vecs[base + 7:base + 8, :HIDDEN]

        wa = wa_ref[l]                                            # (H, 192) bf16
        wqkv = wa[:, :3 * HIDDEN]                                 # (H, 3H), Q cols pre-scaled
        wo = wa[:, 3 * HIDDEN:4 * HIDDEN]                         # (H, H)
        wi = wa[:, 4 * HIDDEN:]                                   # (H, I)
        wf = wf_ref[l]                                            # (I, H) bf16

        qkv = _mm(x, wqkv) + bqkv                                 # fused QKV: (S, 3H)
        ctx_heads = []
        for h in range(N_HEADS):                                  # static unroll over heads
            q = qkv[:, h * D_HEAD:(h + 1) * D_HEAD]
            k = qkv[:, HIDDEN + h * D_HEAD:HIDDEN + (h + 1) * D_HEAD]
            v = qkv[:, 2 * HIDDEN + h * D_HEAD:2 * HIDDEN + (h + 1) * D_HEAD]
            s = _mm_nt(q, k) + key_add          # 1/sqrt(Dh) already folded into Wq/bq
            s = s - jnp.max(s, axis=-1, keepdims=True)            # keep before exp (safety)
            p = jnp.exp(s)
            p = p * pl.reciprocal(jnp.sum(p, axis=-1, keepdims=True), approx=True)
            ctx_heads.append(_mm(p, v))                           # (S, Dh)
        ctx = jnp.concatenate(ctx_heads, axis=-1)                 # (S, H) contiguous
        attn = _mm(ctx, wo) + bo                                  # single output projection
        x1 = _layernorm(attn + x, ln1g, ln1b)
        # TODO(synk): HF BERT uses exact erf-GELU; tanh-approx GELU kept for Mosaic lowering safety.
        inter = jax.nn.gelu(_mm(x1, wi) + bi, approximate=True)
        ffn = _mm(inter, wf) + bff
        x = _layernorm(ffn + x1, ln2g, ln2b)

    # [CLS] is row 0 of this batch's tile; BertPooler + feature head (both tanh).
    cls = x[0:1, :]                                               # (1, H), stays f32
    pool_w = wh_ref[:, :HIDDEN]                                   # (H, H)
    feat_w = wh_ref[:, HIDDEN:HIDDEN + FEATURE_SIZE]              # (H, F)
    pooled = jnp.tanh(_mm(cls, pool_w) + pool_b)                  # BertPooler
    out_ref[0] = jnp.tanh(_mm(pooled, feat_w) + feat_b)


# ----------------------------- parameters -----------------------------

def init_params(key):
    def normal(k, shape, std=0.02):
        return std * jax.random.normal(k, shape, dtype=jnp.float32)

    keys = iter(jax.random.split(key, 32))
    p = {
        "word_emb": normal(next(keys), (VOCAB, HIDDEN)),
        "pos_emb": normal(next(keys), (MAX_POS, HIDDEN)),
        "type_emb": normal(next(keys), (TYPE_VOCAB, HIDDEN)),
        "emb_ln_g": jnp.ones((1, HIDDEN), jnp.float32),
        "emb_ln_b": jnp.zeros((1, HIDDEN), jnp.float32),
        # Stacked per-layer weights (layer axis leading); QKV fused to (H, 3H).
        "wqkv": normal(next(keys), (N_LAYERS, HIDDEN, 3 * HIDDEN)),
        "bqkv": jnp.zeros((N_LAYERS, 1, 3 * HIDDEN), jnp.float32),
        "wo": normal(next(keys), (N_LAYERS, HIDDEN, HIDDEN)),
        "bo": jnp.zeros((N_LAYERS, 1, HIDDEN), jnp.float32),
        "ln1_g": jnp.ones((N_LAYERS, 1, HIDDEN), jnp.float32),
        "ln1_b": jnp.zeros((N_LAYERS, 1, HIDDEN), jnp.float32),
        "wi": normal(next(keys), (N_LAYERS, HIDDEN, INTERMEDIATE)),
        "bi": jnp.zeros((N_LAYERS, 1, INTERMEDIATE), jnp.float32),
        "wf": normal(next(keys), (N_LAYERS, INTERMEDIATE, HIDDEN)),
        "bf": jnp.zeros((N_LAYERS, 1, HIDDEN), jnp.float32),
        "ln2_g": jnp.ones((N_LAYERS, 1, HIDDEN), jnp.float32),
        "ln2_b": jnp.zeros((N_LAYERS, 1, HIDDEN), jnp.float32),
        "pool_w": normal(next(keys), (HIDDEN, HIDDEN)),
        "pool_b": jnp.zeros((1, HIDDEN), jnp.float32),
        "feat_w": normal(next(keys), (HIDDEN, FEATURE_SIZE)),
        "feat_b": jnp.zeros((1, FEATURE_SIZE), jnp.float32),
        # Declared in Model.__init__ but unused in forward (kept for fidelity):
        "post_feat_w": normal(next(keys), (FEATURE_SIZE, 200)),
        "post_feat_b": jnp.zeros((200,), jnp.float32),
        "out_w": normal(next(keys), (200, NUM_CLASSES)),
        "out_b": jnp.zeros((NUM_CLASSES,), jnp.float32),
    }
    return p


def pack_params(p):
    """One-time parameter transform: fold attention scale, pack slabs, cast weights bf16."""
    scale = 1.0 / (D_HEAD ** 0.5)
    wqkv = p["wqkv"].at[:, :, :HIDDEN].multiply(scale)   # fold 1/sqrt(Dh) into Q columns
    bqkv = p["bqkv"].at[:, :, :HIDDEN].multiply(scale)   # ... and into the Q bias

    # All bias / LayerNorm vectors in one f32 slab (VEC_ROWS, 96).
    vecs = jnp.zeros((VEC_ROWS, VEC_W), jnp.float32)
    for l in range(N_LAYERS):
        base = l * VEC_ROWS_PER_LAYER
        vecs = vecs.at[base + 0, :3 * HIDDEN].set(bqkv[l, 0])
        vecs = vecs.at[base + 1, :HIDDEN].set(p["bo"][l, 0])
        vecs = vecs.at[base + 2, :HIDDEN].set(p["ln1_g"][l, 0])
        vecs = vecs.at[base + 3, :HIDDEN].set(p["ln1_b"][l, 0])
        vecs = vecs.at[base + 4, :INTERMEDIATE].set(p["bi"][l, 0])
        vecs = vecs.at[base + 5, :HIDDEN].set(p["bf"][l, 0])
        vecs = vecs.at[base + 6, :HIDDEN].set(p["ln2_g"][l, 0])
        vecs = vecs.at[base + 7, :HIDDEN].set(p["ln2_b"][l, 0])
    vecs = vecs.at[VEC_GLOBAL + 0, :HIDDEN].set(p["emb_ln_g"][0])
    vecs = vecs.at[VEC_GLOBAL + 1, :HIDDEN].set(p["emb_ln_b"][0])
    vecs = vecs.at[VEC_GLOBAL + 2, :HIDDEN].set(p["pool_b"][0])
    vecs = vecs.at[VEC_GLOBAL + 3, :FEATURE_SIZE].set(p["feat_b"][0])

    wa = jnp.concatenate([wqkv, p["wo"], p["wi"]], axis=-1).astype(jnp.bfloat16)    # (L, H, 192)
    wf = p["wf"].astype(jnp.bfloat16)                                               # (L, I, H)
    wh = jnp.concatenate([p["pool_w"], p["feat_w"]], axis=-1).astype(jnp.bfloat16)  # (H, H+F)

    return {
        "word_emb": p["word_emb"], "pos_emb": p["pos_emb"], "type_emb": p["type_emb"],
        "vecs": vecs, "wa": wa, "wf": wf, "wh": wh,
    }


# ----------------------------- model forward -----------------------------

@jax.jit
def model_forward(packed, input_ids, token_type_ids, attention_mask):
    Bb, Ss = input_ids.shape
    # Embedding gathers stay in plain JAX (data-dependent gather), then the fused kernel.
    we = packed["word_emb"][input_ids]                       # (B, S, H)
    pe = packed["pos_emb"][:Ss][None, :, :]                  # (1, S, H)
    te = packed["type_emb"][token_type_ids]                  # (B, S, H)
    x_emb = we + pe + te                                     # (B, S, H) f32

    # HF-style additive key mask ((1-mask)*-1e4), one (1, S) row per batch element.
    key_add = ((1.0 - attention_mask.astype(jnp.float32)) * -10000.0)[:, None, :]  # (B, 1, S)

    out = pl.pallas_call(
        _encoder_kernel,
        out_shape=jax.ShapeDtypeStruct((Bb, 1, FEATURE_SIZE), jnp.float32),
        grid=(Bb,),
        in_specs=[
            pl.BlockSpec((1, Ss, HIDDEN), lambda b: (b, 0, 0)),                  # x_emb
            pl.BlockSpec((1, 1, Ss), lambda b: (b, 0, 0)),                       # key mask
            pl.BlockSpec((VEC_ROWS, VEC_W), lambda b: (0, 0)),                   # bias/LN slab
            pl.BlockSpec((N_LAYERS, HIDDEN, WA_COLS), lambda b: (0, 0, 0)),      # wqkv|wo|wi
            pl.BlockSpec((N_LAYERS, INTERMEDIATE, HIDDEN), lambda b: (0, 0, 0)),  # wf
            pl.BlockSpec((HIDDEN, HIDDEN + FEATURE_SIZE), lambda b: (0, 0)),     # pool_w|feat_w
        ],
        out_specs=pl.BlockSpec((1, 1, FEATURE_SIZE), lambda b: (b, 0, 0)),
        compiler_params=pltpu.CompilerParams(dimension_semantics=("parallel",)),
    )(x_emb, key_add, packed["vecs"], packed["wa"], packed["wf"], packed["wh"])
    return out.reshape(Bb, FEATURE_SIZE)


# ----------------------------- driver -----------------------------

if __name__ == "__main__":
    root = jax.random.PRNGKey(0)
    pkey, ikey = jax.random.split(root)
    params = init_params(pkey)
    packed = pack_params(params)        # one-time: scale folding, slab packing, bf16 cast

    input_ids = jax.random.randint(ikey, (B, S), 0, VOCAB, dtype=jnp.int32)
    token_type_ids = jnp.zeros((B, S), jnp.int32)
    attention_mask = jnp.ones((B, S), jnp.int32)

    feats = model_forward(packed, input_ids, token_type_ids, attention_mask)
    feats = jax.block_until_ready(feats)

    assert feats.shape == (B, FEATURE_SIZE), feats.shape
    assert bool(jnp.all(jnp.isfinite(feats)))
    assert bool(jnp.all(jnp.abs(feats) <= 1.0))   # tanh-bounded features
    print("KERNEL_OK")
</pallas_src>

<mosaic_0001>
module attributes {stable_mosaic.version = 11 : i64} {
  func.func @_encoder_kernel(%arg0: i32, %arg1: memref<1x8x32xf32, #tpu.memory_space<vmem>>, %arg2: memref<1x1x8xf32, #tpu.memory_space<vmem>>, %arg3: memref<20x96xf32, #tpu.memory_space<vmem>>, %arg4: memref<2x32x192xbf16, #tpu.memory_space<vmem>>, %arg5: memref<2x64x32xbf16, #tpu.memory_space<vmem>>, %arg6: memref<32x48xbf16, #tpu.memory_space<vmem>>, %arg7: memref<1x1x16xf32, #tpu.memory_space<vmem>>) attributes {dimension_semantics = [#tpu.dimension_semantics<parallel>], iteration_bounds = array<i64: 2>, scalar_prefetch = 0 : i64, scratch_operands = 0 : i64, tpu.core_type = #tpu.core_type<tc>, window_params = [{transform_indices = @transform_0, window_bounds = array<i64: 1, 8, 32>}, {transform_indices = @transform_1, window_bounds = array<i64: 1, 1, 8>}, {pipeline_mode = #tpu.pipeline_mode<synchronous>, transform_indices = @transform_2, window_bounds = array<i64: 20, 96>}, {pipeline_mode = #tpu.pipeline_mode<synchronous>, transform_indices = @transform_3, window_bounds = array<i64: 2, 32, 192>}, {pipeline_mode = #tpu.pipeline_mode<synchronous>, transform_indices = @transform_4, window_bounds = array<i64: 2, 64, 32>}, {pipeline_mode = #tpu.pipeline_mode<synchronous>, transform_indices = @transform_5, window_bounds = array<i64: 32, 48>}, {transform_indices = @transform_6, window_bounds = array<i64: 1, 1, 16>}]} {
    %c0 = arith.constant 0 : index
    %c0_0 = arith.constant 0 : index
    %0 = vector.load %arg3[%c0, %c0_0] : memref<20x96xf32, #tpu.memory_space<vmem>>, vector<20x96xf32>
    %1 = vector.extract_strided_slice %0 {offsets = [16, 0], sizes = [1, 32], strides = [1, 1]} : vector<20x96xf32> to vector<1x32xf32>
    %2 = vector.extract_strided_slice %0 {offsets = [17, 0], sizes = [1, 32], strides = [1, 1]} : vector<20x96xf32> to vector<1x32xf32>
    %3 = vector.extract_strided_slice %0 {offsets = [18, 0], sizes = [1, 32], strides = [1, 1]} : vector<20x96xf32> to vector<1x32xf32>
    %4 = vector.extract_strided_slice %0 {offsets = [19, 0], sizes = [1, 16], strides = [1, 1]} : vector<20x96xf32> to vector<1x16xf32>
    %c0_1 = arith.constant 0 : index
    %c0_2 = arith.constant 0 : index
    %c0_3 = arith.constant 0 : index
    %5 = vector.load %arg1[%c0_1, %c0_2, %c0_3] : memref<1x8x32xf32, #tpu.memory_space<vmem>>, vector<1x8x32xf32>
    %6 = vector.shape_cast %5 : vector<1x8x32xf32> to vector<8x32xf32>
    %cst = arith.constant dense<0.000000e+00> : vector<8xf32>
    %7 = vector.multi_reduction <add>, %6, %cst [1] : vector<8x32xf32> to vector<8xf32>
    %8 = vector.shape_cast %7 : vector<8xf32> to vector<8x1xf32>
    %cst_4 = arith.constant 3.200000e+01 : f32
    %9 = vector.broadcast %cst_4 : f32 to vector<8x1xf32>
    %10 = arith.divf %8, %9 : vector<8x1xf32>
    %11 = vector.broadcast %10 : vector<8x1xf32> to vector<8x32xf32>
    %12 = arith.subf %6, %11 : vector<8x32xf32>
    %13 = arith.mulf %12, %12 : vector<8x32xf32>
    %cst_5 = arith.constant dense<0.000000e+00> : vector<8xf32>
    %14 = vector.multi_reduction <add>, %13, %cst_5 [1] : vector<8x32xf32> to vector<8xf32>
    %15 = vector.shape_cast %14 : vector<8xf32> to vector<8x1xf32>
    %cst_6 = arith.constant 3.200000e+01 : f32
    %16 = vector.broadcast %cst_6 : f32 to vector<8x1xf32>
    %17 = arith.divf %15, %16 : vector<8x1xf32>
    %18 = vector.broadcast %10 : vector<8x1xf32> to vector<8x32xf32>
    %19 = arith.subf %6, %18 : vector<8x32xf32>
    %cst_7 = arith.constant 9.99999996E-13 : f32
    %20 = vector.broadcast %cst_7 : f32 to vector<8x1xf32>
    %21 = arith.addf %17, %20 : vector<8x1xf32>
    %22 = math.rsqrt %21 : vector<8x1xf32>
    %23 = vector.broadcast %22 : vector<8x1xf32> to vector<8x32xf32>
    %24 = arith.mulf %19, %23 : vector<8x32xf32>
    %25 = vector.broadcast %1 : vector<1x32xf32> to vector<8x32xf32>
    %26 = arith.mulf %24, %25 : vector<8x32xf32>
    %27 = vector.broadcast %2 : vector<1x32xf32> to vector<8x32xf32>
    %28 = arith.addf %26, %27 : vector<8x32xf32>
    %c0_8 = arith.constant 0 : index
    %c0_9 = arith.constant 0 : index
    %c0_10 = arith.constant 0 : index
    %29 = vector.load %arg2[%c0_8, %c0_9, %c0_10] : memref<1x1x8xf32, #tpu.memory_space<vmem>>, vector<1x1x8xf32>
    %30 = vector.shape_cast %29 : vector<1x1x8xf32> to vector<1x8xf32>
    %31 = vector.extract_strided_slice %0 {offsets = [0, 0], sizes = [1, 96], strides = [1, 1]} : vector<20x96xf32> to vector<1x96xf32>
    %32 = vector.extract_strided_slice %0 {offsets = [1, 0], sizes = [1, 32], strides = [1, 1]} : vector<20x96xf32> to vector<1x32xf32>
    %33 = vector.extract_strided_slice %0 {offsets = [2, 0], sizes = [1, 32], strides = [1, 1]} : vector<20x96xf32> to vector<1x32xf32>
    %34 = vector.extract_strided_slice %0 {offsets = [3, 0], sizes = [1, 32], strides = [1, 1]} : vector<20x96xf32> to vector<1x32xf32>
    %35 = vector.extract_strided_slice %0 {offsets = [4, 0], sizes = [1, 64], strides = [1, 1]} : vector<20x96xf32> to vector<1x64xf32>
    %36 = vector.extract_strided_slice %0 {offsets = [5, 0], sizes = [1, 32], strides = [1, 1]} : vector<20x96xf32> to vector<1x32xf32>
    %37 = vector.extract_strided_slice %0 {offsets = [6, 0], sizes = [1, 32], strides = [1, 1]} : vector<20x96xf32> to vector<1x32xf32>
    %38 = vector.extract_strided_slice %0 {offsets = [7, 0], sizes = [1, 32], strides = [1, 1]} : vector<20x96xf32> to vector<1x32xf32>
    %c0_11 = arith.constant 0 : index
    %c0_12 = arith.constant 0 : index
    %c0_13 = arith.constant 0 : index
    %39 = vector.load %arg4[%c0_11, %c0_12, %c0_13] : memref<2x32x192xbf16, #tpu.memory_space<vmem>>, vector<1x32x192xbf16>
    %40 = vector.shape_cast %39 : vector<1x32x192xbf16> to vector<32x192xbf16>
    %41 = vector.extract_strided_slice %40 {offsets = [0, 0], sizes = [32, 96], strides = [1, 1]} : vector<32x192xbf16> to vector<32x96xbf16>
    %42 = vector.extract_strided_slice %40 {offsets = [0, 96], sizes = [32, 32], strides = [1, 1]} : vector<32x192xbf16> to vector<32x32xbf16>
    %43 = vector.extract_strided_slice %40 {offsets = [0, 128], sizes = [32, 64], strides = [1, 1]} : vector<32x192xbf16> to vector<32x64xbf16>
    %c0_14 = arith.constant 0 : index
    %c0_15 = arith.constant 0 : index
    %c0_16 = arith.constant 0 : index
    %44 = vector.load %arg5[%c0_14, %c0_15, %c0_16] : memref<2x64x32xbf16, #tpu.memory_space<vmem>>, vector<1x64x32xbf16>
    %45 = vector.shape_cast %44 : vector<1x64x32xbf16> to vector<64x32xbf16>
    %46 = arith.truncf %28 : vector<8x32xf32> to vector<8x32xbf16>
    %cst_17 = arith.constant dense<0.000000e+00> : vector<8x96xf32>
    %47 = tpu.matmul %46, %41, %cst_17 {dimension_numbers = #tpu.dot_dimension_numbers<[1], [0], [0], [1], [0, 0, 1, 1], [], []>} : vector<8x32xbf16>, vector<32x96xbf16>, vector<8x96xf32> -> vector<8x96xf32>
    %48 = vector.broadcast %31 : vector<1x96xf32> to vector<8x96xf32>
    %49 = arith.addf %47, %48 : vector<8x96xf32>
    %50 = vector.extract_strided_slice %49 {offsets = [0, 0], sizes = [8, 16], strides = [1, 1]} : vector<8x96xf32> to vector<8x16xf32>
    %51 = vector.extract_strided_slice %49 {offsets = [0, 32], sizes = [8, 16], strides = [1, 1]} : vector<8x96xf32> to vector<8x16xf32>
    %52 = vector.extract_strided_slice %49 {offsets = [0, 64], sizes = [8, 16], strides = [1, 1]} : vector<8x96xf32> to vector<8x16xf32>
    %53 = arith.truncf %50 : vector<8x16xf32> to vector<8x16xbf16>
    %54 = arith.truncf %51 : vector<8x16xf32> to vector<8x16xbf16>
    %cst_18 = arith.constant dense<0.000000e+00> : vector<8x8xf32>
    %55 = tpu.matmul %53, %54, %cst_18 {dimension_numbers = #tpu.dot_dimension_numbers<[1], [1], [0], [0], [0, 0, 1, 0], [], []>} : vector<8x16xbf16>, vector<8x16xbf16>, vector<8x8xf32> -> vector<8x8xf32>
    %56 = vector.broadcast %30 : vector<1x8xf32> to vector<8x8xf32>
    %57 = arith.addf %55, %56 : vector<8x8xf32>
    %cst_19 = arith.constant dense<0xFF800000> : vector<8xf32>
    %58 = vector.multi_reduction <maximumf>, %57, %cst_19 [1] : vector<8x8xf32> to vector<8xf32>
    %59 = vector.shape_cast %58 : vector<8xf32> to vector<8x1xf32>
    %60 = vector.broadcast %59 : vector<8x1xf32> to vector<8x8xf32>
    %61 = arith.subf %57, %60 : vector<8x8xf32>
    %62 = math.exp %61 : vector<8x8xf32>
    %cst_20 = arith.constant dense<0.000000e+00> : vector<8xf32>
    %63 = vector.multi_reduction <add>, %62, %cst_20 [1] : vector<8x8xf32> to vector<8xf32>
    %64 = vector.shape_cast %63 : vector<8xf32> to vector<8x1xf32>
    %65 = tpu.reciprocal %64 {approx = true} : vector<8x1xf32> -> vector<8x1xf32>
    %66 = vector.broadcast %65 : vector<8x1xf32> to vector<8x8xf32>
    %67 = arith.mulf %62, %66 : vector<8x8xf32>
    %68 = arith.truncf %67 : vector<8x8xf32> to vector<8x8xbf16>
    %69 = arith.truncf %52 : vector<8x16xf32> to vector<8x16xbf16>
    %cst_21 = arith.constant dense<0.000000e+00> : vector<8x16xf32>
    %70 = tpu.matmul %68, %69, %cst_21 {dimension_numbers = #tpu.dot_dimension_numbers<[1], [0], [0], [1], [0, 0, 1, 1], [], []>} : vector<8x8xbf16>, vector<8x16xbf16>, vector<8x16xf32> -> vector<8x16xf32>
    %71 = vector.extract_strided_slice %49 {offsets = [0, 16], sizes = [8, 16], strides = [1, 1]} : vector<8x96xf32> to vector<8x16xf32>
    %72 = vector.extract_strided_slice %49 {offsets = [0, 48], sizes = [8, 16], strides = [1, 1]} : vector<8x96xf32> to vector<8x16xf32>
    %73 = vector.extract_strided_slice %49 {offsets = [0, 80], sizes = [8, 16], strides = [1, 1]} : vector<8x96xf32> to vector<8x16xf32>
    %74 = arith.truncf %71 : vector<8x16xf32> to vector<8x16xbf16>
    %75 = arith.truncf %72 : vector<8x16xf32> to vector<8x16xbf16>
    %cst_22 = arith.constant dense<0.000000e+00> : vector<8x8xf32>
    %76 = tpu.matmul %74, %75, %cst_22 {dimension_numbers = #tpu.dot_dimension_numbers<[1], [1], [0], [0], [0, 0, 1, 0], [], []>} : vector<8x16xbf16>, vector<8x16xbf16>, vector<8x8xf32> -> vector<8x8xf32>
    %77 = vector.broadcast %30 : vector<1x8xf32> to vector<8x8xf32>
    %78 = arith.addf %76, %77 : vector<8x8xf32>
    %cst_23 = arith.constant dense<0xFF800000> : vector<8xf32>
    %79 = vector.multi_reduction <maximumf>, %78, %cst_23 [1] : vector<8x8xf32> to vector<8xf32>
    %80 = vector.shape_cast %79 : vector<8xf32> to vector<8x1xf32>
    %81 = vector.broadcast %80 : vector<8x1xf32> to vector<8x8xf32>
    %82 = arith.subf %78, %81 : vector<8x8xf32>
    %83 = math.exp %82 : vector<8x8xf32>
    %cst_24 = arith.constant dense<0.000000e+00> : vector<8xf32>
    %84 = vector.multi_reduction <add>, %83, %cst_24 [1] : vector<8x8xf32> to vector<8xf32>
    %85 = vector.shape_cast %84 : vector<8xf32> to vector<8x1xf32>
    %86 = tpu.reciprocal %85 {approx = true} : vector<8x1xf32> -> vector<8x1xf32>
    %87 = vector.broadcast %86 : vector<8x1xf32> to vector<8x8xf32>
    %88 = arith.mulf %83, %87 : vector<8x8xf32>
    %89 = arith.truncf %88 : vector<8x8xf32> to vector<8x8xbf16>
    %90 = arith.truncf %73 : vector<8x16xf32> to vector<8x16xbf16>
    %cst_25 = arith.constant dense<0.000000e+00> : vector<8x16xf32>
    %91 = tpu.matmul %89, %90, %cst_25 {dimension_numbers = #tpu.dot_dimension_numbers<[1], [0], [0], [1], [0, 0, 1, 1], [], []>} : vector<8x8xbf16>, vector<8x16xbf16>, vector<8x16xf32> -> vector<8x16xf32>
    %92 = tpu.concatenate %70, %91 in 1 : vector<8x16xf32>, vector<8x16xf32> -> vector<8x32xf32>
    %93 = arith.truncf %92 : vector<8x32xf32> to vector<8x32xbf16>
    %cst_26 = arith.constant dense<0.000000e+00> : vector<8x32xf32>
    %94 = tpu.matmul %93, %42, %cst_26 {dimension_numbers = #tpu.dot_dimension_numbers<[1], [0], [0], [1], [0, 0, 1, 1], [], []>} : vector<8x32xbf16>, vector<32x32xbf16>, vector<8x32xf32> -> vector<8x32xf32>
    %95 = vector.broadcast %32 : vector<1x32xf32> to vector<8x32xf32>
    %96 = arith.addf %94, %95 : vector<8x32xf32>
    %97 = arith.addf %96, %28 : vector<8x32xf32>
    %cst_27 = arith.constant dense<0.000000e+00> : vector<8xf32>
    %98 = vector.multi_reduction <add>, %97, %cst_27 [1] : vector<8x32xf32> to vector<8xf32>
    %99 = vector.shape_cast %98 : vector<8xf32> to vector<8x1xf32>
    %cst_28 = arith.constant 3.200000e+01 : f32
    %100 = vector.broadcast %cst_28 : f32 to vector<8x1xf32>
    %101 = arith.divf %99, %100 : vector<8x1xf32>
    %102 = vector.broadcast %101 : vector<8x1xf32> to vector<8x32xf32>
    %103 = arith.subf %97, %102 : vector<8x32xf32>
    %104 = arith.mulf %103, %103 : vector<8x32xf32>
    %cst_29 = arith.constant dense<0.000000e+00> : vector<8xf32>
    %105 = vector.multi_reduction <add>, %104, %cst_29 [1] : vector<8x32xf32> to vector<8xf32>
    %106 = vector.shape_cast %105 : vector<8xf32> to vector<8x1xf32>
    %cst_30 = arith.constant 3.200000e+01 : f32
    %107 = vector.broadcast %cst_30 : f32 to vector<8x1xf32>
    %108 = arith.divf %106, %107 : vector<8x1xf32>
    %109 = vector.broadcast %101 : vector<8x1xf32> to vector<8x32xf32>
    %110 = arith.subf %97, %109 : vector<8x32xf32>
    %cst_31 = arith.constant 9.99999996E-13 : f32
    %111 = vector.broadcast %cst_31 : f32 to vector<8x1xf32>
    %112 = arith.addf %108, %111 : vector<8x1xf32>
    %113 = math.rsqrt %112 : vector<8x1xf32>
    %114 = vector.broadcast %113 : vector<8x1xf32> to vector<8x32xf32>
    %115 = arith.mulf %110, %114 : vector<8x32xf32>
    %116 = vector.broadcast %33 : vector<1x32xf32> to vector<8x32xf32>
    %117 = arith.mulf %115, %116 : vector<8x32xf32>
    %118 = vector.broadcast %34 : vector<1x32xf32> to vector<8x32xf32>
    %119 = arith.addf %117, %118 : vector<8x32xf32>
    %120 = arith.truncf %119 : vector<8x32xf32> to vector<8x32xbf16>
    %cst_32 = arith.constant dense<0.000000e+00> : vector<8x64xf32>
    %121 = tpu.matmul %120, %43, %cst_32 {dimension_numbers = #tpu.dot_dimension_numbers<[1], [0], [0], [1], [0, 0, 1, 1], [], []>} : vector<8x32xbf16>, vector<32x64xbf16>, vector<8x64xf32> -> vector<8x64xf32>
    %122 = vector.broadcast %35 : vector<1x64xf32> to vector<8x64xf32>
    %123 = arith.addf %121, %122 : vector<8x64xf32>
    %124 = arith.mulf %123, %123 : vector<8x64xf32>
    %125 = arith.mulf %123, %124 : vector<8x64xf32>
    %cst_33 = arith.constant 4.471500e-02 : f32
    %126 = vector.broadcast %cst_33 : f32 to vector<8x64xf32>
    %127 = arith.mulf %126, %125 : vector<8x64xf32>
    %128 = arith.addf %123, %127 : vector<8x64xf32>
    %cst_34 = arith.constant 0.797884583 : f32
    %129 = vector.broadcast %cst_34 : f32 to vector<8x64xf32>
    %130 = arith.mulf %129, %128 : vector<8x64xf32>
    %131 = math.tanh %130 : vector<8x64xf32>
    %cst_35 = arith.constant 1.000000e+00 : f32
    %132 = vector.broadcast %cst_35 : f32 to vector<8x64xf32>
    %133 = arith.addf %132, %131 : vector<8x64xf32>
    %cst_36 = arith.constant 5.000000e-01 : f32
    %134 = vector.broadcast %cst_36 : f32 to vector<8x64xf32>
    %135 = arith.mulf %134, %133 : vector<8x64xf32>
    %136 = arith.mulf %123, %135 : vector<8x64xf32>
    %137 = arith.truncf %136 : vector<8x64xf32> to vector<8x64xbf16>
    %cst_37 = arith.constant dense<0.000000e+00> : vector<8x32xf32>
    %138 = tpu.matmul %137, %45, %cst_37 {dimension_numbers = #tpu.dot_dimension_numbers<[1], [0], [0], [1], [0, 0, 1, 1], [], []>} : vector<8x64xbf16>, vector<64x32xbf16>, vector<8x32xf32> -> vector<8x32xf32>
    %139 = vector.broadcast %36 : vector<1x32xf32> to vector<8x32xf32>
    %140 = arith.addf %138, %139 : vector<8x32xf32>
    %141 = arith.addf %140, %119 : vector<8x32xf32>
    %cst_38 = arith.constant dense<0.000000e+00> : vector<8xf32>
    %142 = vector.multi_reduction <add>, %141, %cst_38 [1] : vector<8x32xf32> to vector<8xf32>
    %143 = vector.shape_cast %142 : vector<8xf32> to vector<8x1xf32>
    %cst_39 = arith.constant 3.200000e+01 : f32
    %144 = vector.broadcast %cst_39 : f32 to vector<8x1xf32>
    %145 = arith.divf %143, %144 : vector<8x1xf32>
    %146 = vector.broadcast %145 : vector<8x1xf32> to vector<8x32xf32>
    %147 = arith.subf %141, %146 : vector<8x32xf32>
    %148 = arith.mulf %147, %147 : vector<8x32xf32>
    %cst_40 = arith.constant dense<0.000000e+00> : vector<8xf32>
    %149 = vector.multi_reduction <add>, %148, %cst_40 [1] : vector<8x32xf32> to vector<8xf32>
    %150 = vector.shape_cast %149 : vector<8xf32> to vector<8x1xf32>
    %cst_41 = arith.constant 3.200000e+01 : f32
    %151 = vector.broadcast %cst_41 : f32 to vector<8x1xf32>
    %152 = arith.divf %150, %151 : vector<8x1xf32>
    %153 = vector.broadcast %145 : vector<8x1xf32> to vector<8x32xf32>
    %154 = arith.subf %141, %153 : vector<8x32xf32>
    %cst_42 = arith.constant 9.99999996E-13 : f32
    %155 = vector.broadcast %cst_42 : f32 to vector<8x1xf32>
    %156 = arith.addf %152, %155 : vector<8x1xf32>
    %157 = math.rsqrt %156 : vector<8x1xf32>
    %158 = vector.broadcast %157 : vector<8x1xf32> to vector<8x32xf32>
    %159 = arith.mulf %154, %158 : vector<8x32xf32>
    %160 = vector.broadcast %37 : vector<1x32xf32> to vector<8x32xf32>
    %161 = arith.mulf %159, %160 : vector<8x32xf32>
    %162 = vector.broadcast %38 : vector<1x32xf32> to vector<8x32xf32>
    %163 = arith.addf %161, %162 : vector<8x32xf32>
    %164 = vector.extract_strided_slice %0 {offsets = [8, 0], sizes = [1, 96], strides = [1, 1]} : vector<20x96xf32> to vector<1x96xf32>
    %165 = vector.extract_strided_slice %0 {offsets = [9, 0], sizes = [1, 32], strides = [1, 1]} : vector<20x96xf32> to vector<1x32xf32>
    %166 = vector.extract_strided_slice %0 {offsets = [10, 0], sizes = [1, 32], strides = [1, 1]} : vector<20x96xf32> to vector<1x32xf32>
    %167 = vector.extract_strided_slice %0 {offsets = [11, 0], sizes = [1, 32], strides = [1, 1]} : vector<20x96xf32> to vector<1x32xf32>
    %168 = vector.extract_strided_slice %0 {offsets = [12, 0], sizes = [1, 64], strides = [1, 1]} : vector<20x96xf32> to vector<1x64xf32>
    %169 = vector.extract_strided_slice %0 {offsets = [13, 0], sizes = [1, 32], strides = [1, 1]} : vector<20x96xf32> to vector<1x32xf32>
    %170 = vector.extract_strided_slice %0 {offsets = [14, 0], sizes = [1, 32], strides = [1, 1]} : vector<20x96xf32> to vector<1x32xf32>
    %171 = vector.extract_strided_slice %0 {offsets = [15, 0], sizes = [1, 32], strides = [1, 1]} : vector<20x96xf32> to vector<1x32xf32>
    %c1 = arith.constant 1 : index
    %c0_43 = arith.constant 0 : index
    %c0_44 = arith.constant 0 : index
    %172 = vector.load %arg4[%c1, %c0_43, %c0_44] : memref<2x32x192xbf16, #tpu.memory_space<vmem>>, vector<1x32x192xbf16>
    %173 = vector.shape_cast %172 : vector<1x32x192xbf16> to vector<32x192xbf16>
    %174 = vector.extract_strided_slice %173 {offsets = [0, 0], sizes = [32, 96], strides = [1, 1]} : vector<32x192xbf16> to vector<32x96xbf16>
    %175 = vector.extract_strided_slice %173 {offsets = [0, 96], sizes = [32, 32], strides = [1, 1]} : vector<32x192xbf16> to vector<32x32xbf16>
    %176 = vector.extract_strided_slice %173 {offsets = [0, 128], sizes = [32, 64], strides = [1, 1]} : vector<32x192xbf16> to vector<32x64xbf16>
    %c1_45 = arith.constant 1 : index
    %c0_46 = arith.constant 0 : index
    %c0_47 = arith.constant 0 : index
    %177 = vector.load %arg5[%c1_45, %c0_46, %c0_47] : memref<2x64x32xbf16, #tpu.memory_space<vmem>>, vector<1x64x32xbf16>
    %178 = vector.shape_cast %177 : vector<1x64x32xbf16> to vector<64x32xbf16>
    %179 = arith.truncf %163 : vector<8x32xf32> to vector<8x32xbf16>
    %cst_48 = arith.constant dense<0.000000e+00> : vector<8x96xf32>
    %180 = tpu.matmul %179, %174, %cst_48 {dimension_numbers = #tpu.dot_dimension_numbers<[1], [0], [0], [1], [0, 0, 1, 1], [], []>} : vector<8x32xbf16>, vector<32x96xbf16>, vector<8x96xf32> -> vector<8x96xf32>
    %181 = vector.broadcast %164 : vector<1x96xf32> to vector<8x96xf32>
    %182 = arith.addf %180, %181 : vector<8x96xf32>
    %183 = vector.extract_strided_slice %182 {offsets = [0, 0], sizes = [8, 16], strides = [1, 1]} : vector<8x96xf32> to vector<8x16xf32>
    %184 = vector.extract_strided_slice %182 {offsets = [0, 32], sizes = [8, 16], strides = [1, 1]} : vector<8x96xf32> to vector<8x16xf32>
    %185 = vector.extract_strided_slice %182 {offsets = [0, 64], sizes = [8, 16], strides = [1, 1]} : vector<8x96xf32> to vector<8x16xf32>
    %186 = arith.truncf %183 : vector<8x16xf32> to vector<8x16xbf16>
    %187 = arith.truncf %184 : vector<8x16xf32> to vector<8x16xbf16>
    %cst_49 = arith.constant dense<0.000000e+00> : vector<8x8xf32>
    %188 = tpu.matmul %186, %187, %cst_49 {dimension_numbers = #tpu.dot_dimension_numbers<[1], [1], [0], [0], [0, 0, 1, 0], [], []>} : vector<8x16xbf16>, vector<8x16xbf16>, vector<8x8xf32> -> vector<8x8xf32>
    %189 = vector.broadcast %30 : vector<1x8xf32> to vector<8x8xf32>
    %190 = arith.addf %188, %189 : vector<8x8xf32>
    %cst_50 = arith.constant dense<0xFF800000> : vector<8xf32>
    %191 = vector.multi_reduction <maximumf>, %190, %cst_50 [1] : vector<8x8xf32> to vector<8xf32>
    %192 = vector.shape_cast %191 : vector<8xf32> to vector<8x1xf32>
    %193 = vector.broadcast %192 : vector<8x1xf32> to vector<8x8xf32>
    %194 = arith.subf %190, %193 : vector<8x8xf32>
    %195 = math.exp %194 : vector<8x8xf32>
    %cst_51 = arith.constant dense<0.000000e+00> : vector<8xf32>
    %196 = vector.multi_reduction <add>, %195, %cst_51 [1] : vector<8x8xf32> to vector<8xf32>
    %197 = vector.shape_cast %196 : vector<8xf32> to vector<8x1xf32>
    %198 = tpu.reciprocal %197 {approx = true} : vector<8x1xf32> -> vector<8x1xf32>
    %199 = vector.broadcast %198 : vector<8x1xf32> to vector<8x8xf32>
    %200 = arith.mulf %195, %199 : vector<8x8xf32>
    %201 = arith.truncf %200 : vector<8x8xf32> to vector<8x8xbf16>
    %202 = arith.truncf %185 : vector<8x16xf32> to vector<8x16xbf16>
    %cst_52 = arith.constant dense<0.000000e+00> : vector<8x16xf32>
    %203 = tpu.matmul %201, %202, %cst_52 {dimension_numbers = #tpu.dot_dimension_numbers<[1], [0], [0], [1], [0, 0, 1, 1], [], []>} : vector<8x8xbf16>, vector<8x16xbf16>, vector<8x16xf32> -> vector<8x16xf32>
    %204 = vector.extract_strided_slice %182 {offsets = [0, 16], sizes = [8, 16], strides = [1, 1]} : vector<8x96xf32> to vector<8x16xf32>
    %205 = vector.extract_strided_slice %182 {offsets = [0, 48], sizes = [8, 16], strides = [1, 1]} : vector<8x96xf32> to vector<8x16xf32>
    %206 = vector.extract_strided_slice %182 {offsets = [0, 80], sizes = [8, 16], strides = [1, 1]} : vector<8x96xf32> to vector<8x16xf32>
    %207 = arith.truncf %204 : vector<8x16xf32> to vector<8x16xbf16>
    %208 = arith.truncf %205 : vector<8x16xf32> to vector<8x16xbf16>
    %cst_53 = arith.constant dense<0.000000e+00> : vector<8x8xf32>
    %209 = tpu.matmul %207, %208, %cst_53 {dimension_numbers = #tpu.dot_dimension_numbers<[1], [1], [0], [0], [0, 0, 1, 0], [], []>} : vector<8x16xbf16>, vector<8x16xbf16>, vector<8x8xf32> -> vector<8x8xf32>
    %210 = vector.broadcast %30 : vector<1x8xf32> to vector<8x8xf32>
    %211 = arith.addf %209, %210 : vector<8x8xf32>
    %cst_54 = arith.constant dense<0xFF800000> : vector<8xf32>
    %212 = vector.multi_reduction <maximumf>, %211, %cst_54 [1] : vector<8x8xf32> to vector<8xf32>
    %213 = vector.shape_cast %212 : vector<8xf32> to vector<8x1xf32>
    %214 = vector.broadcast %213 : vector<8x1xf32> to vector<8x8xf32>
    %215 = arith.subf %211, %214 : vector<8x8xf32>
    %216 = math.exp %215 : vector<8x8xf32>
    %cst_55 = arith.constant dense<0.000000e+00> : vector<8xf32>
    %217 = vector.multi_reduction <add>, %216, %cst_55 [1] : vector<8x8xf32> to vector<8xf32>
    %218 = vector.shape_cast %217 : vector<8xf32> to vector<8x1xf32>
    %219 = tpu.reciprocal %218 {approx = true} : vector<8x1xf32> -> vector<8x1xf32>
    %220 = vector.broadcast %219 : vector<8x1xf32> to vector<8x8xf32>
    %221 = arith.mulf %216, %220 : vector<8x8xf32>
    %222 = arith.truncf %221 : vector<8x8xf32> to vector<8x8xbf16>
    %223 = arith.truncf %206 : vector<8x16xf32> to vector<8x16xbf16>
    %cst_56 = arith.constant dense<0.000000e+00> : vector<8x16xf32>
    %224 = tpu.matmul %222, %223, %cst_56 {dimension_numbers = #tpu.dot_dimension_numbers<[1], [0], [0], [1], [0, 0, 1, 1], [], []>} : vector<8x8xbf16>, vector<8x16xbf16>, vector<8x16xf32> -> vector<8x16xf32>
    %225 = tpu.concatenate %203, %224 in 1 : vector<8x16xf32>, vector<8x16xf32> -> vector<8x32xf32>
    %226 = arith.truncf %225 : vector<8x32xf32> to vector<8x32xbf16>
    %cst_57 = arith.constant dense<0.000000e+00> : vector<8x32xf32>
    %227 = tpu.matmul %226, %175, %cst_57 {dimension_numbers = #tpu.dot_dimension_numbers<[1], [0], [0], [1], [0, 0, 1, 1], [], []>} : vector<8x32xbf16>, vector<32x32xbf16>, vector<8x32xf32> -> vector<8x32xf32>
    %228 = vector.broadcast %165 : vector<1x32xf32> to vector<8x32xf32>
    %229 = arith.addf %227, %228 : vector<8x32xf32>
    %230 = arith.addf %229, %163 : vector<8x32xf32>
    %cst_58 = arith.constant dense<0.000000e+00> : vector<8xf32>
    %231 = vector.multi_reduction <add>, %230, %cst_58 [1] : vector<8x32xf32> to vector<8xf32>
    %232 = vector.shape_cast %231 : vector<8xf32> to vector<8x1xf32>
    %cst_59 = arith.constant 3.200000e+01 : f32
    %233 = vector.broadcast %cst_59 : f32 to vector<8x1xf32>
    %234 = arith.divf %232, %233 : vector<8x1xf32>
    %235 = vector.broadcast %234 : vector<8x1xf32> to vector<8x32xf32>
    %236 = arith.subf %230, %235 : vector<8x32xf32>
    %237 = arith.mulf %236, %236 : vector<8x32xf32>
    %cst_60 = arith.constant dense<0.000000e+00> : vector<8xf32>
    %238 = vector.multi_reduction <add>, %237, %cst_60 [1] : vector<8x32xf32> to vector<8xf32>
    %239 = vector.shape_cast %238 : vector<8xf32> to vector<8x1xf32>
    %cst_61 = arith.constant 3.200000e+01 : f32
    %240 = vector.broadcast %cst_61 : f32 to vector<8x1xf32>
    %241 = arith.divf %239, %240 : vector<8x1xf32>
    %242 = vector.broadcast %234 : vector<8x1xf32> to vector<8x32xf32>
    %243 = arith.subf %230, %242 : vector<8x32xf32>
    %cst_62 = arith.constant 9.99999996E-13 : f32
    %244 = vector.broadcast %cst_62 : f32 to vector<8x1xf32>
    %245 = arith.addf %241, %244 : vector<8x1xf32>
    %246 = math.rsqrt %245 : vector<8x1xf32>
    %247 = vector.broadcast %246 : vector<8x1xf32> to vector<8x32xf32>
    %248 = arith.mulf %243, %247 : vector<8x32xf32>
    %249 = vector.broadcast %166 : vector<1x32xf32> to vector<8x32xf32>
    %250 = arith.mulf %248, %249 : vector<8x32xf32>
    %251 = vector.broadcast %167 : vector<1x32xf32> to vector<8x32xf32>
    %252 = arith.addf %250, %251 : vector<8x32xf32>
    %253 = arith.truncf %252 : vector<8x32xf32> to vector<8x32xbf16>
    %cst_63 = arith.constant dense<0.000000e+00> : vector<8x64xf32>
    %254 = tpu.matmul %253, %176, %cst_63 {dimension_numbers = #tpu.dot_dimension_numbers<[1], [0], [0], [1], [0, 0, 1, 1], [], []>} : vector<8x32xbf16>, vector<32x64xbf16>, vector<8x64xf32> -> vector<8x64xf32>
    %255 = vector.broadcast %168 : vector<1x64xf32> to vector<8x64xf32>
    %256 = arith.addf %254, %255 : vector<8x64xf32>
    %257 = arith.mulf %256, %256 : vector<8x64xf32>
    %258 = arith.mulf %256, %257 : vector<8x64xf32>
    %cst_64 = arith.constant 4.471500e-02 : f32
    %259 = vector.broadcast %cst_64 : f32 to vector<8x64xf32>
    %260 = arith.mulf %259, %258 : vector<8x64xf32>
    %261 = arith.addf %256, %260 : vector<8x64xf32>
    %cst_65 = arith.constant 0.797884583 : f32
    %262 = vector.broadcast %cst_65 : f32 to vector<8x64xf32>
    %263 = arith.mulf %262, %261 : vector<8x64xf32>
    %264 = math.tanh %263 : vector<8x64xf32>
    %cst_66 = arith.constant 1.000000e+00 : f32
    %265 = vector.broadcast %cst_66 : f32 to vector<8x64xf32>
    %266 = arith.addf %265, %264 : vector<8x64xf32>
    %cst_67 = arith.constant 5.000000e-01 : f32
    %267 = vector.broadcast %cst_67 : f32 to vector<8x64xf32>
    %268 = arith.mulf %267, %266 : vector<8x64xf32>
    %269 = arith.mulf %256, %268 : vector<8x64xf32>
    %270 = arith.truncf %269 : vector<8x64xf32> to vector<8x64xbf16>
    %cst_68 = arith.constant dense<0.000000e+00> : vector<8x32xf32>
    %271 = tpu.matmul %270, %178, %cst_68 {dimension_numbers = #tpu.dot_dimension_numbers<[1], [0], [0], [1], [0, 0, 1, 1], [], []>} : vector<8x64xbf16>, vector<64x32xbf16>, vector<8x32xf32> -> vector<8x32xf32>
    %272 = vector.broadcast %169 : vector<1x32xf32> to vector<8x32xf32>
    %273 = arith.addf %271, %272 : vector<8x32xf32>
    %274 = arith.addf %273, %252 : vector<8x32xf32>
    %cst_69 = arith.constant dense<0.000000e+00> : vector<8xf32>
    %275 = vector.multi_reduction <add>, %274, %cst_69 [1] : vector<8x32xf32> to vector<8xf32>
    %276 = vector.shape_cast %275 : vector<8xf32> to vector<8x1xf32>
    %cst_70 = arith.constant 3.200000e+01 : f32
    %277 = vector.broadcast %cst_70 : f32 to vector<8x1xf32>
    %278 = arith.divf %276, %277 : vector<8x1xf32>
    %279 = vector.broadcast %278 : vector<8x1xf32> to vector<8x32xf32>
    %280 = arith.subf %274, %279 : vector<8x32xf32>
    %281 = arith.mulf %280, %280 : vector<8x32xf32>
    %cst_71 = arith.constant dense<0.000000e+00> : vector<8xf32>
    %282 = vector.multi_reduction <add>, %281, %cst_71 [1] : vector<8x32xf32> to vector<8xf32>
    %283 = vector.shape_cast %282 : vector<8xf32> to vector<8x1xf32>
    %cst_72 = arith.constant 3.200000e+01 : f32
    %284 = vector.broadcast %cst_72 : f32 to vector<8x1xf32>
    %285 = arith.divf %283, %284 : vector<8x1xf32>
    %286 = vector.broadcast %278 : vector<8x1xf32> to vector<8x32xf32>
    %287 = arith.subf %274, %286 : vector<8x32xf32>
    %cst_73 = arith.constant 9.99999996E-13 : f32
    %288 = vector.broadcast %cst_73 : f32 to vector<8x1xf32>
    %289 = arith.addf %285, %288 : vector<8x1xf32>
    %290 = math.rsqrt %289 : vector<8x1xf32>
    %291 = vector.broadcast %290 : vector<8x1xf32> to vector<8x32xf32>
    %292 = arith.mulf %287, %291 : vector<8x32xf32>
    %293 = vector.broadcast %170 : vector<1x32xf32> to vector<8x32xf32>
    %294 = arith.mulf %292, %293 : vector<8x32xf32>
    %295 = vector.broadcast %171 : vector<1x32xf32> to vector<8x32xf32>
    %296 = arith.addf %294, %295 : vector<8x32xf32>
    %297 = vector.extract_strided_slice %296 {offsets = [0, 0], sizes = [1, 32], strides = [1, 1]} : vector<8x32xf32> to vector<1x32xf32>
    %c0_74 = arith.constant 0 : index
    %c0_75 = arith.constant 0 : index
    %298 = vector.load %arg6[%c0_74, %c0_75] : memref<32x48xbf16, #tpu.memory_space<vmem>>, vector<32x32xbf16>
    %c0_76 = arith.constant 0 : index
    %c32 = arith.constant 32 : index
    %299 = vector.load %arg6[%c0_76, %c32] : memref<32x48xbf16, #tpu.memory_space<vmem>>, vector<32x16xbf16>
    %300 = arith.truncf %297 : vector<1x32xf32> to vector<1x32xbf16>
    %cst_77 = arith.constant dense<0.000000e+00> : vector<1x32xf32>
    %301 = tpu.matmul %300, %298, %cst_77 {dimension_numbers = #tpu.dot_dimension_numbers<[1], [0], [0], [1], [0, 0, 1, 1], [], []>} : vector<1x32xbf16>, vector<32x32xbf16>, vector<1x32xf32> -> vector<1x32xf32>
    %302 = arith.addf %301, %3 : vector<1x32xf32>
    %303 = math.tanh %302 : vector<1x32xf32>
    %304 = arith.truncf %303 : vector<1x32xf32> to vector<1x32xbf16>
    %cst_78 = arith.constant dense<0.000000e+00> : vector<1x16xf32>
    %305 = tpu.matmul %304, %299, %cst_78 {dimension_numbers = #tpu.dot_dimension_numbers<[1], [0], [0], [1], [0, 0, 1, 1], [], []>} : vector<1x32xbf16>, vector<32x16xbf16>, vector<1x16xf32> -> vector<1x16xf32>
    %306 = arith.addf %305, %4 : vector<1x16xf32>
    %307 = math.tanh %306 : vector<1x16xf32>
    %c0_79 = arith.constant 0 : index
    %c0_80 = arith.constant 0 : index
    %c0_81 = arith.constant 0 : index
    %308 = vector.load %arg7[%c0_79, %c0_80, %c0_81] : memref<1x1x16xf32, #tpu.memory_space<vmem>>, vector<1x1x16xf32>
    %309 = vector.shape_cast %308 : vector<1x1x16xf32> to vector<1x16xf32>
    %310 = vector.shape_cast %307 : vector<1x16xf32> to vector<1x1x16xf32>
    tpu.vector_store %arg7[%c0_79, %c0_80, %c0_81], %310 {strides = array<i32>} : memref<1x1x16xf32, #tpu.memory_space<vmem>>, vector<1x1x16xf32>,
    return
  }
  func.func @transform_0(%arg0: i32) -> (i32, i32, i32) {
    %c0_i32 = arith.constant 0 : i32
    %c0_i32_0 = arith.constant 0 : i32
    %c0_i32_1 = arith.constant 0 : i32
    return %arg0, %c0_i32, %c0_i32_0 : i32, i32, i32
  }
  func.func @transform_1(%arg0: i32) -> (i32, i32, i32) {
    %c0_i32 = arith.constant 0 : i32
    %c0_i32_0 = arith.constant 0 : i32
    %c0_i32_1 = arith.constant 0 : i32
    return %arg0, %c0_i32, %c0_i32_0 : i32, i32, i32
  }
  func.func @transform_2(%arg0: i32) -> (i32, i32) {
    %c0_i32 = arith.constant 0 : i32
    %c0_i32_0 = arith.constant 0 : i32
    %c0_i32_1 = arith.constant 0 : i32
    return %c0_i32, %c0_i32_0 : i32, i32
  }
  func.func @transform_3(%arg0: i32) -> (i32, i32, i32) {
    %c0_i32 = arith.constant 0 : i32
    %c0_i32_0 = arith.constant 0 : i32
    %c0_i32_1 = arith.constant 0 : i32
    %c0_i32_2 = arith.constant 0 : i32
    return %c0_i32, %c0_i32_0, %c0_i32_1 : i32, i32, i32
  }
  func.func @transform_4(%arg0: i32) -> (i32, i32, i32) {
    %c0_i32 = arith.constant 0 : i32
    %c0_i32_0 = arith.constant 0 : i32
    %c0_i32_1 = arith.constant 0 : i32
    %c0_i32_2 = arith.constant 0 : i32
    return %c0_i32, %c0_i32_0, %c0_i32_1 : i32, i32, i32
  }
  func.func @transform_5(%arg0: i32) -> (i32, i32) {
    %c0_i32 = arith.constant 0 : i32
    %c0_i32_0 = arith.constant 0 : i32
    %c0_i32_1 = arith.constant 0 : i32
    return %c0_i32, %c0_i32_0 : i32, i32
  }
  func.func @transform_6(%arg0: i32) -> (i32, i32, i32) {
    %c0_i32 = arith.constant 0 : i32
    %c0_i32_0 = arith.constant 0 : i32
    %c0_i32_1 = arith.constant 0 : i32
    return %arg0, %c0_i32, %c0_i32_0 : i32, i32, i32
  }
}

</mosaic_0001>

<llo_original>
// kernel: model_forward.1
$region0: #{model_forward.1}
  #allocation0 [shape = 'u32[]', space=smem, size = 0x4, offset = 0x4, fixed_abs, tag = 'smem constant byte address 0x4 - core index']
  #allocation1 [shape = 'u32[144,128]{1,0:T(1,128)}', space=vmem, size = 0x12000, scoped, tag = 'internal scratch']
  %s0 = inlined_call_operand.vmem [shape: f32[2,8,32], index: 0, kind: input, shape index: {}]
  %s1 = inlined_call_operand.vmem [shape: f32[2,1,8], index: 1, kind: input, shape index: {}]
  %s2 = inlined_call_operand.vmem [shape: f32[20,96], index: 2, kind: input, shape index: {}]
  %s3 = inlined_call_operand.vmem [shape: bf16[2,32,192], index: 3, kind: input, shape index: {}]
  %s4 = inlined_call_operand.vmem [shape: bf16[2,64,32], index: 4, kind: input, shape index: {}]
  %s5 = inlined_call_operand.vmem [shape: bf16[32,48], index: 5, kind: input, shape index: {}]
  %s6 = inlined_call_operand.hbm [shape: f32[2,1,16], index: 6, kind: output, shape index: {}]
  %s7 = sld [smem:[#allocation0]]
  $region57: #{model_forward.1} parent=0
    _
  %s9 = ssub.s32 1, %s7
  %s10 = scalar_select 0, %s9, %s7
  $region1: #{model_forward.1} parent=0
    #allocation2 [shape = 'u8[1024]{0}', space=vmem, size = 0x400, scoped, tag = 'output window, operand 0']
    #allocation3 [shape = 's32[2]{0}', space=sflag, size = 0x8, scoped, tag = 'scoped memory for model_forward.1']
    %11 = vsyncpa [#allocation3], 0
    %s12 = scalar_lea.sflag [#allocation3], 1
    %13 = vsyncpa %s12, 0
    loop: start=0, step=1, limit=4
    $region2: #{model_forward.1} parent=1 // loop_pre_header
      _
    $region3: #{model_forward.1} parent=1 // loop_header
      %s15 = sphi 0, %s19
      %p16 = scmp.ge.s32.totalorder %s15, 4
      %s25 = sphi 0, %s27
      %s28 = sphi 0, %s25
      %s29 = sphi 0, %s28
      %s45 = sphi 0, %s29
      %s51 = sphi 0, %s53
      %s54 = sphi 0, %s51
      %s55 = sphi 0, %s54
      %s71 = sphi 0, %s55
      %s75 = sphi 0, %s75
      %s77 = sphi 0, %s75
      %s78 = sphi 0, %s77
      %s92 = sphi 0, %s78
      %s96 = sphi 0, %s96
      %s98 = sphi 0, %s96
      %s99 = sphi 0, %s98
      %s113 = sphi 0, %s99
      %s117 = sphi 0, %s117
      %s119 = sphi 0, %s117
      %s120 = sphi 0, %s119
      %s134 = sphi 0, %s120
      %s138 = sphi 0, %s138
      %s140 = sphi 0, %s138
      %s141 = sphi 0, %s140
      %s155 = sphi 0, %s141
      %s161 = sphi 0, %s163
      %s164 = sphi 0, %s161
      %s165 = sphi 0, %s164
      %s181 = sphi 0, %s165
    $region4: #{model_forward.1} parent=1 // loop_header_branch
      %18 = sbr.rel (%p16) target = $region8
    $region5: #{model_forward.1} parent=1 // loop_body
      %s20 = ssub.s32 %s15, 1
      %s21 = ssub.s32 %s15, 2
      %s22 = sadd.s32 %s15, 1
      %s23 = ssub.s32 %s15, %s22
      %p24 = scmp.eq.s32.totalorder %s23, 0
      %s26 = sadd.s32 %s25, 1
      %s27 = scalar_select %p24, %s25, %s26
      %p30 = pneg %p24
      %p31 = scmp.eq.s32.totalorder %s15, 1
      %p32 = por %p30, %p31
      %p33 = scmp.ne.s32.totalorder %s25, %s28
      %p34 = scmp.eq.s32.totalorder %s15, 0
      %p35 = por %p33, %p34
      %p36 = scmp.ne.s32.totalorder %s25, %s28
      %p37 = scmp.eq.s32.totalorder %s20, 1
      %p38 = por %p36, %p37
      %p39 = scmp.ne.s32.totalorder %s28, %s29
      %p40 = scmp.eq.s32.totalorder %s20, 0
      %p41 = por %p39, %p40
      %p42 = scmp.ne.s32.totalorder %s28, %s29
      %p43 = scmp.eq.s32.totalorder %s21, 1
      %p44 = por %p42, %p43
      %p46 = scmp.ne.s32.totalorder %s29, %s45
      %p47 = scmp.eq.s32.totalorder %s21, 0
      %p48 = por %p46, %p47
      %s49 = ssub.s32 %s15, %s22
      %p50 = scmp.eq.s32.totalorder %s49, 0
      %s52 = sadd.s32 %s51, 1
      %s53 = scalar_select %p50, %s51, %s52
      %p56 = pneg %p50
      %p57 = scmp.eq.s32.totalorder %s15, 1
      %p58 = por %p56, %p57
      %p59 = scmp.ne.s32.totalorder %s51, %s54
      %p60 = scmp.eq.s32.totalorder %s15, 0
      %p61 = por %p59, %p60
      %p62 = scmp.ne.s32.totalorder %s51, %s54
      %p63 = scmp.eq.s32.totalorder %s20, 1
      %p64 = por %p62, %p63
      %p65 = scmp.ne.s32.totalorder %s54, %s55
      %p66 = scmp.eq.s32.totalorder %s20, 0
      %p67 = por %p65, %p66
      %p68 = scmp.ne.s32.totalorder %s54, %s55
      %p69 = scmp.eq.s32.totalorder %s21, 1
      %p70 = por %p68, %p69
      %p72 = scmp.ne.s32.totalorder %s55, %s71
      %p73 = scmp.eq.s32.totalorder %s21, 0
      %p74 = por %p72, %p73
      %s76 = sadd.s32 %s75, 1
      %p79 = scmp.eq.s32.totalorder %s15, 1
      %p80 = scmp.ne.s32.totalorder %s75, %s77
      %p81 = scmp.eq.s32.totalorder %s15, 0
      %p82 = por %p80, %p81
      %p83 = scmp.ne.s32.totalorder %s75, %s77
      %p84 = scmp.eq.s32.totalorder %s20, 1
      %p85 = por %p83, %p84
      %p86 = scmp.ne.s32.totalorder %s77, %s78
      %p87 = scmp.eq.s32.totalorder %s20, 0
      %p88 = por %p86, %p87
      %p89 = scmp.ne.s32.totalorder %s77, %s78
      %p90 = scmp.eq.s32.totalorder %s21, 1
      %p91 = por %p89, %p90
      %p93 = scmp.ne.s32.totalorder %s78, %s92
      %p94 = scmp.eq.s32.totalorder %s21, 0
      %p95 = por %p93, %p94
      %s97 = sadd.s32 %s96, 1
      %p100 = scmp.eq.s32.totalorder %s15, 1
      %p101 = scmp.ne.s32.totalorder %s96, %s98
      %p102 = scmp.eq.s32.totalorder %s15, 0
      %p103 = por %p101, %p102
      %p104 = scmp.ne.s32.totalorder %s96, %s98
      %p105 = scmp.eq.s32.totalorder %s20, 1
      %p106 = por %p104, %p105
      %p107 = scmp.ne.s32.totalorder %s98, %s99
      %p108 = scmp.eq.s32.totalorder %s20, 0
      %p109 = por %p107, %p108
      %p110 = scmp.ne.s32.totalorder %s98, %s99
      %p111 = scmp.eq.s32.totalorder %s21, 1
      %p112 = por %p110, %p111
      %p114 = scmp.ne.s32.totalorder %s99, %s113
      %p115 = scmp.eq.s32.totalorder %s21, 0
      %p116 = por %p114, %p115
      %s118 = sadd.s32 %s117, 1
      %p121 = scmp.eq.s32.totalorder %s15, 1
      %p122 = scmp.ne.s32.totalorder %s117, %s119
      %p123 = scmp.eq.s32.totalorder %s15, 0
      %p124 = por %p122, %p123
      %p125 = scmp.ne.s32.totalorder %s117, %s119
      %p126 = scmp.eq.s32.totalorder %s20, 1
      %p127 = por %p125, %p126
      %p128 = scmp.ne.s32.totalorder %s119, %s120
      %p129 = scmp.eq.s32.totalorder %s20, 0
      %p130 = por %p128, %p129
      %p131 = scmp.ne.s32.totalorder %s119, %s120
      %p132 = scmp.eq.s32.totalorder %s21, 1
      %p133 = por %p131, %p132
      %p135 = scmp.ne.s32.totalorder %s120, %s134
      %p136 = scmp.eq.s32.totalorder %s21, 0
      %p137 = por %p135, %p136
      %s139 = sadd.s32 %s138, 1
      %p142 = scmp.eq.s32.totalorder %s15, 1
      %p143 = scmp.ne.s32.totalorder %s138, %s140
      %p144 = scmp.eq.s32.totalorder %s15, 0
      %p145 = por %p143, %p144
      %p146 = scmp.ne.s32.totalorder %s138, %s140
      %p147 = scmp.eq.s32.totalorder %s20, 1
      %p148 = por %p146, %p147
      %p149 = scmp.ne.s32.totalorder %s140, %s141
      %p150 = scmp.eq.s32.totalorder %s20, 0
      %p151 = por %p149, %p150
      %p152 = scmp.ne.s32.totalorder %s140, %s141
      %p153 = scmp.eq.s32.totalorder %s21, 1
      %p154 = por %p152, %p153
      %p156 = scmp.ne.s32.totalorder %s141, %s155
      %p157 = scmp.eq.s32.totalorder %s21, 0
      %p158 = por %p156, %p157
      %s159 = ssub.s32 %s15, %s22
      %p160 = scmp.eq.s32.totalorder %s159, 0
      %s162 = sadd.s32 %s161, 1
      %s163 = scalar_select %p160, %s161, %s162
      %p166 = pneg %p160
      %p167 = scmp.eq.s32.totalorder %s15, 1
      %p168 = por %p166, %p167
      %p169 = scmp.ne.s32.totalorder %s161, %s164
      %p170 = scmp.eq.s32.totalorder %s15, 0
      %p171 = por %p169, %p170
      %p172 = scmp.ne.s32.totalorder %s161, %s164
      %p173 = scmp.eq.s32.totalorder %s20, 1
      %p174 = por %p172, %p173
      %p175 = scmp.ne.s32.totalorder %s164, %s165
      %p176 = scmp.eq.s32.totalorder %s20, 0
      %p177 = por %p175, %p176
      %p178 = scmp.ne.s32.totalorder %s164, %s165
      %p179 = scmp.eq.s32.totalorder %s21, 1
      %p180 = por %p178, %p179
      %p182 = scmp.ne.s32.totalorder %s165, %s181
      %p183 = scmp.eq.s32.totalorder %s21, 0
      %p184 = por %p182, %p183
      %p185 = scmp.le.s32.totalorder 1, %s15
      %p186 = scmp.lt.s32.totalorder %s15, 3
      %p187 = pnand %p185, %p186
      %p188 = pneg %p187
      // Predicated region
      $region9: #{model_forward.1} parent=5 // pred_check
        _
      $region10: #{model_forward.1} parent=5 // pred_check_branch
        %190 = sbr.rel (%p187) target = $region12
      $region11: #{model_forward.1} parent=5 // pred_region
        %s191 = ssub.s32 %s15, 1
        // Predicated region
        $region13: #{model_forward.1} parent=11 // pred_check
          %p192 = pneg %p88
        $region14: #{model_forward.1} parent=11 // pred_check_branch
          %194 = sbr.rel (%p192) target = $region16
        $region15: #{model_forward.1} parent=11 // pred_region
          _
        $region16: #{model_forward.1} parent=11 // pred_fallthru
          _
        // Predicated region
        $region17: #{model_forward.1} parent=11 // pred_check
          %p195 = pneg %p109
        $region18: #{model_forward.1} parent=11 // pred_check_branch
          %197 = sbr.rel (%p195) target = $region20
        $region19: #{model_forward.1} parent=11 // pred_region
          _
        $region20: #{model_forward.1} parent=11 // pred_fallthru
          _
        // Predicated region
        $region21: #{model_forward.1} parent=11 // pred_check
          %p198 = pneg %p130
        $region22: #{model_forward.1} parent=11 // pred_check_branch
          %200 = sbr.rel (%p198) target = $region24
        $region23: #{model_forward.1} parent=11 // pred_region
          _
        $region24: #{model_forward.1} parent=11 // pred_fallthru
          _
        // Predicated region
        $region25: #{model_forward.1} parent=11 // pred_check
          %p201 = pneg %p151
        $region26: #{model_forward.1} parent=11 // pred_check_branch
          %203 = sbr.rel (%p201) target = $region28
        $region27: #{model_forward.1} parent=11 // pred_region
          _
        $region28: #{model_forward.1} parent=11 // pred_fallthru
          _
      $region12: #{model_forward.1} parent=5 // pred_fallthru
        _
      %p204 = scmp.lt.s32.totalorder %s15, 2
      // Predicated region
      $region29: #{model_forward.1} parent=5 // pred_check
        %p205 = pneg %p204
      $region30: #{model_forward.1} parent=5 // pred_check_branch
        %207 = sbr.rel (%p205) target = $region32
      $region31: #{model_forward.1} parent=5 // pred_region
        // Predicated region
        $region33: #{model_forward.1} parent=31 // pred_check
          %p208 = pneg %p35
        $region34: #{model_forward.1} parent=31 // pred_check_branch
          %210 = sbr.rel (%p208) target = $region36
        $region35: #{model_forward.1} parent=31 // pred_region
          %p211 = scmp.lt.s32.totalorder %s15, 1
          %s212 = scalar_select %p211, %s15, 1
          %s213 = smul.addr %s212, 8
          %s214 = scalar_lea.vmem %s0, %s213
        $region36: #{model_forward.1} parent=31 // pred_fallthru
          _
        // Predicated region
        $region37: #{model_forward.1} parent=31 // pred_check
          %p215 = pneg %p61
        $region38: #{model_forward.1} parent=31 // pred_check_branch
          %217 = sbr.rel (%p215) target = $region40
        $region39: #{model_forward.1} parent=31 // pred_region
          %p218 = scmp.lt.s32.totalorder %s15, 1
          %s219 = scalar_select %p218, %s15, 1
          %s220 = scalar_lea.vmem %s1, %s219
        $region40: #{model_forward.1} parent=31 // pred_fallthru
          _
      $region32: #{model_forward.1} parent=5 // pred_fallthru
        _
      %p221 = scmp.le.s32.totalorder 1, %s15
      %p222 = scmp.lt.s32.totalorder %s15, 3
      %p223 = pnand %p221, %p222
      %p224 = pneg %p223
      // Predicated region
      $region41: #{model_forward.1} parent=5 // pred_check
        _
      $region42: #{model_forward.1} parent=5 // pred_check_branch
        %226 = sbr.rel (%p223) target = $region44
      $region43: #{model_forward.1} parent=5 // pred_region
        %s227 = ssub.s32 %s15, 1
        %p228 = scmp.lt.s32.totalorder %s20, 1
        %s229 = scalar_select %p228, %s20, 1
        %s230 = smul.addr %s229, 8
        %s231 = scalar_lea.vmem %s0, %s230
        %p232 = pneg %p41
        %p233 = pneg %p38
        %p234 = scmp.lt.s32.totalorder %s20, 1
        %s235 = scalar_select %p234, %s20, 1
        %s236 = scalar_lea.vmem %s1, %s235
        %p237 = pneg %p67
        %p238 = pneg %p64
        %p239 = pneg %p88
        %p240 = pneg %p85
        %p241 = pneg %p109
        %p242 = pneg %p106
        %p243 = pneg %p130
        %p244 = pneg %p127
        %p245 = pneg %p151
        %p246 = pneg %p148
        %p247 = pneg %p177
        %p248 = pneg %p174
        %s249 = sand.u32 %s164, 1
        %s250 = scalar_lea.sflag [#allocation3], %s249
        %s251 = sand.u32 %s164, 1
        %s252 = scalar_lea.vmem [#allocation2], %s251
        %p253 = scmp.lt.s32.totalorder %s20, 1
        %s254 = scalar_select %p253, %s20, 1
        %s255 = smul.addr %s254, 8
        %s256 = scalar_lea.vmem %s0, %s255
        %p257 = scmp.lt.s32.totalorder %s20, 1
        %s258 = scalar_select %p257, %s20, 1
        %s259 = scalar_lea.vmem %s1, %s258
        %v261 = vld [vmem:[%s2] sm:$0xff]
        %v262 = vld [vmem:[%s2 + $0x8] sm:$0xff]
        %v263 = vld [vmem:[%s2 + $0x10] sm:$0xf]
        %v264 = vld [vmem:[%s256] sm:$0xff]
        %vm265 = vcmask 261120
        %v266 = vsel %vm265, %v264, 0.0
        %267 = vadd.xlane.f32.xlu0 %v266
        %v268 = vpop.xlane.xlu0 %267
        %v269 = vrcp.pop 32.0
        %v270 = vmul.f32 %v268, %v269
        %v271 = vsub.f32 %v264, %v270
        %v272 = vmul.f32 %v271, %v271
        %v273 = vsel %vm265, %v272, 0.0
        %274 = vadd.xlane.f32.xlu0 %v273
        %v275 = vpop.xlane.xlu0 %274
        %v276 = vmul.f32 %v275, %v269
        %v277 = vadd.f32 %v276, 1e-12
        %v278 = vrsqrt.pop %v277
        %v279 = vmul.f32 %v271, %v278
        %v280 = vlaneseq
        %v281 = vshrl.u32 %v280, 7
        %v282 = vsub.s32 0, %v281
        %v283 = vrot.slane %v263, %v282
        %v284 = vmul.f32 %v279, %v283
        %v285 = vlaneseq
        %v286 = vshrl.u32 %v285, 7
        %v287 = vsub.s32 1, %v286
        %v288 = vrot.slane %v263, %v287
        %v289 = vadd.f32 %v284, %v288
        %v290 = vld [vmem:[%s259] sm:$0x1]
        %v291 = vld [vmem:[%s3] sm:$0xff]
        %v292 = vld [vmem:[%s3 + $0x8] sm:$0xff]
        %v293 = vld [vmem:[%s3 + $0x10] sm:$0xff]
        %v294 = vld [vmem:[%s3 + $0x18] sm:$0xff]
        %v295 = vld [vmem:[%s4] sm:$0xf]
        %v296 = vld [vmem:[%s4 + $0x4] sm:$0xf]
        %v297 = vld [vmem:[%s4 + $0x8] sm:$0xf]
        %v298 = vld [vmem:[%s4 + $0xc] sm:$0xf]
        %v299 = vld [vmem:[%s4 + $0x10] sm:$0xf]
        %v300 = vld [vmem:[%s4 + $0x14] sm:$0xf]
        %v301 = vld [vmem:[%s4 + $0x18] sm:$0xf]
        %v302 = vld [vmem:[%s4 + $0x1c] sm:$0xf]
        %v303 = vpack.c.bf16 %v289, %v289
        %v304 = vlaneseq
        %v305 = vshrl.u32 %v304, 7
        %v306 = vsub.s32 0, %v305
        %v307 = vrot.slane %v261, %v306
        %v312 = vunpack.c.l.b16 %v291
        %v313 = vunpack.c.l.b16 %v292
        %v314 = vunpack.c.l.b16 %v293
        %v315 = vunpack.c.l.b16 %v294
        %v316 = vpack.c.b16 %v313, %v312
        %v317 = vpack.c.b16 %v315, %v314
        %v321 = vsel %vm265, %v303, 0
        %323 = vmatprep.subr.bf16.mxu0 0
        %324 = vmatpush1.bf16.msra.mxu0 %v316
        %325 = vmatprep.subr.bf16.mxu0 0
        %326 = vmatpush1.bf16.msra.mxu0 %v317
        %327 = vmatprep.subr.bf16.mxu0 0
        %328 = vmatpush1.bf16.msra.mxu0 0
        %329 = vmatprep.subr.bf16.mxu0 0
        %330 = vmatpush1.bf16.msra.mxu0 0
        %331 = vmatprep.subr.bf16.mxu0 0
        %332 = vmatpush1.bf16.msra.mxu0 0
        %333 = vmatprep.subr.bf16.mxu0 0
        %334 = vmatpush1.bf16.msra.mxu0 0
        %335 = vmatprep.subr.bf16.mxu0 0
        %336 = vmatpush1.bf16.msra.mxu0 0
        %337 = vmatprep.subr.bf16.mxu0 0
        %338 = vmatpush1.bf16.msra.mxu0 0
        %339 = vmatprep.subr.bf16.mxu0 0
        %340 = vmatpush1.bf16.msra.mxu0 0
        %341 = vmatprep.subr.bf16.mxu0 0
        %342 = vmatpush1.bf16.msra.mxu0 0
        %343 = vmatprep.subr.bf16.mxu0 0
        %344 = vmatpush1.bf16.msra.mxu0 0
        %345 = vmatprep.subr.bf16.mxu0 0
        %346 = vmatpush1.bf16.msra.mxu0 0
        %347 = vmatprep.subr.bf16.mxu0 0
        %348 = vmatpush1.bf16.msra.mxu0 0
        %349 = vmatprep.subr.bf16.mxu0 0
        %350 = vmatpush1.bf16.msra.mxu0 0
        %351 = vmatprep.subr.bf16.mxu0 0
        %352 = vmatpush1.bf16.msra.mxu0 0
        %353 = vmatprep.subr.bf16.mxu0 0
        %354 = vmatpush1.bf16.msra.mxu0 0
        %355 = vmatprep.mubr.bf16.mxu0 0
        %356 = vmatmul.mubr.bf16.gmra.mrb[0].mxu0 %v321
        %v357 = vpop.f32.mrb[0].mxu0
        %v358 = vadd.f32 %v307, %v357
        %v359 = vpop.f32.mrb[0].mxu0
        %v360 = vpop.f32.mrb[0].mxu0
        %v361 = vpop.f32.mrb[0].mxu0
        %362 = vdwg.mxu0
        %v363 = vpack.c.bf16 %v358, %v358
        %v365 = vlaneseq
        %v366 = vshrl.u32 %v365, 7
        %v367 = vsub.s32 0, %v366
        %v368 = vrot.slane %v290, %v367
        %371 = vrot.lane.b32.xlu0 %v363, 96
        %v372 = vpop.permute.xlu0 %371
        %vm373 = vcmask 130048
        %v375 = vsel %vm373, %v363, 0
        %v378 = vsel %vm373, %v372, 0
        %380 = vmatprep.subr.bf16.mxu0 0
        %381 = vmatpush1.bf16.xpose.msra.mxu0 %v378
        %382 = vmatprep.subr.bf16.mxu0 0
        %383 = vmatpush1.bf16.xpose.msra.mxu0 0
        %384 = vmatprep.subr.bf16.mxu0 0
        %385 = vmatpush1.bf16.xpose.msra.mxu0 0
        %386 = vmatprep.subr.bf16.mxu0 0
        %387 = vmatpush1.bf16.xpose.msra.mxu0 0
        %388 = vmatprep.subr.bf16.mxu0 0
        %389 = vmatpush1.bf16.xpose.msra.mxu0 0
        %390 = vmatprep.subr.bf16.mxu0 0
        %391 = vmatpush1.bf16.xpose.msra.mxu0 0
        %392 = vmatprep.subr.bf16.mxu0 0
        %393 = vmatpush1.bf16.xpose.msra.mxu0 0
        %394 = vmatprep.subr.bf16.mxu0 0
        %395 = vmatpush1.bf16.xpose.msra.mxu0 0
        %396 = vmatprep.subr.bf16.mxu0 0
        %397 = vmatpush1.bf16.xpose.msra.mxu0 0
        %398 = vmatprep.subr.bf16.mxu0 0
        %399 = vmatpush1.bf16.xpose.msra.mxu0 0
        %400 = vmatprep.subr.bf16.mxu0 0
        %401 = vmatpush1.bf16.xpose.msra.mxu0 0
        %402 = vmatprep.subr.bf16.mxu0 0
        %403 = vmatpush1.bf16.xpose.msra.mxu0 0
        %404 = vmatprep.subr.bf16.mxu0 0
        %405 = vmatpush1.bf16.xpose.msra.mxu0 0
        %406 = vmatprep.subr.bf16.mxu0 0
        %407 = vmatpush1.bf16.xpose.msra.mxu0 0
        %408 = vmatprep.subr.bf16.mxu0 0
        %409 = vmatpush1.bf16.xpose.msra.mxu0 0
        %410 = vmatprep.subr.bf16.mxu0 0
        %411 = vmatpush1.bf16.xpose.msra.mxu0 0
        %412 = vmatprep.mubr.bf16.mxu0 0
        %413 = vmatmul.mubr.bf16.gmra.mrb[0].mxu0 %v375
        %v414 = vpop.f32.mrb[0].mxu0
        %v415 = vadd.f32 %v368, %v414
        %v416 = vpop.f32.mrb[0].mxu0
        %v417 = vpop.f32.mrb[0].mxu0
        %v418 = vpop.f32.mrb[0].mxu0
        %419 = vdwg.mxu0
        %vm420 = vcmask 64512
        %v421 = vsel %vm420, %v415, -inf
        %422 = vmax.xlane.f32.xlu0 %v421
        %v423 = vpop.xlane.xlu0 %422
        %v424 = vsub.f32 %v415, %v423
        %v425 = vmul.f32 %v424, 1.442695
        %v426 = vpow.pop %v425
        %v427 = vsel %vm420, %v426, 0.0
        %428 = vadd.xlane.f32.xlu0 %v427
        %v429 = vpop.xlane.xlu0 %428
        %v430 = vrcp.pop %v429
        %v431 = vmul.f32 %v426, %v430
        %v432 = vpack.c.bf16 %v431, %v431
        %433 = vrot.lane.b32.xlu0 %v363, 64
        %v434 = vpop.permute.xlu0 %433
        %v436 = vsel %vm420, %v432, 0
        %vm438 = vcmask 1043456
        %v440 = vsel %vm438, %v434, 0
        %442 = vmatprep.subr.bf16.mxu0 0
        %443 = vmatpush1.bf16.msra.mxu0 %v440
        %444 = vmatprep.subr.bf16.mxu0 0
        %445 = vmatpush1.bf16.msra.mxu0 0
        %446 = vmatprep.subr.bf16.mxu0 0
        %447 = vmatpush1.bf16.msra.mxu0 0
        %448 = vmatprep.subr.bf16.mxu0 0
        %449 = vmatpush1.bf16.msra.mxu0 0
        %450 = vmatprep.subr.bf16.mxu0 0
        %451 = vmatpush1.bf16.msra.mxu0 0
        %452 = vmatprep.subr.bf16.mxu0 0
        %453 = vmatpush1.bf16.msra.mxu0 0
        %454 = vmatprep.subr.bf16.mxu0 0
        %455 = vmatpush1.bf16.msra.mxu0 0
        %456 = vmatprep.subr.bf16.mxu0 0
        %457 = vmatpush1.bf16.msra.mxu0 0
        %458 = vmatprep.subr.bf16.mxu0 0
        %459 = vmatpush1.bf16.msra.mxu0 0
        %460 = vmatprep.subr.bf16.mxu0 0
        %461 = vmatpush1.bf16.msra.mxu0 0
        %462 = vmatprep.subr.bf16.mxu0 0
        %463 = vmatpush1.bf16.msra.mxu0 0
        %464 = vmatprep.subr.bf16.mxu0 0
        %465 = vmatpush1.bf16.msra.mxu0 0
        %466 = vmatprep.subr.bf16.mxu0 0
        %467 = vmatpush1.bf16.msra.mxu0 0
        %468 = vmatprep.subr.bf16.mxu0 0
        %469 = vmatpush1.bf16.msra.mxu0 0
        %470 = vmatprep.subr.bf16.mxu0 0
        %471 = vmatpush1.bf16.msra.mxu0 0
        %472 = vmatprep.subr.bf16.mxu0 0
        %473 = vmatpush1.bf16.msra.mxu0 0
        %474 = vmatprep.mubr.bf16.mxu0 0
        %475 = vmatmul.mubr.bf16.gmra.mrb[0].mxu0 %v436
        %v476 = vpop.f32.mrb[0].mxu0
        %v477 = vadd.f32 0.0, %v476
        %v478 = vpop.f32.mrb[0].mxu0
        %v479 = vpop.f32.mrb[0].mxu0
        %v480 = vpop.f32.mrb[0].mxu0
        %481 = vdwg.mxu0
        %482 = vrot.lane.b32.xlu0 %v363, 112
        %v483 = vpop.permute.xlu0 %482
        %484 = vrot.lane.b32.xlu0 %v363, 80
        %v485 = vpop.permute.xlu0 %484
        %v487 = vsel %vm373, %v483, 0
        %v490 = vsel %vm373, %v485, 0
        %492 = vmatprep.subr.bf16.mxu0 0
        %493 = vmatpush1.bf16.xpose.msra.mxu0 %v490
        %494 = vmatprep.subr.bf16.mxu0 0
        %495 = vmatpush1.bf16.xpose.msra.mxu0 0
        %496 = vmatprep.subr.bf16.mxu0 0
        %497 = vmatpush1.bf16.xpose.msra.mxu0 0
        %498 = vmatprep.subr.bf16.mxu0 0
        %499 = vmatpush1.bf16.xpose.msra.mxu0 0
        %500 = vmatprep.subr.bf16.mxu0 0
        %501 = vmatpush1.bf16.xpose.msra.mxu0 0
        %502 = vmatprep.subr.bf16.mxu0 0
        %503 = vmatpush1.bf16.xpose.msra.mxu0 0
        %504 = vmatprep.subr.bf16.mxu0 0
        %505 = vmatpush1.bf16.xpose.msra.mxu0 0
        %506 = vmatprep.subr.bf16.mxu0 0
        %507 = vmatpush1.bf16.xpose.msra.mxu0 0
        %508 = vmatprep.subr.bf16.mxu0 0
        %509 = vmatpush1.bf16.xpose.msra.mxu0 0
        %510 = vmatprep.subr.bf16.mxu0 0
        %511 = vmatpush1.bf16.xpose.msra.mxu0 0
        %512 = vmatprep.subr.bf16.mxu0 0
        %513 = vmatpush1.bf16.xpose.msra.mxu0 0
        %514 = vmatprep.subr.bf16.mxu0 0
        %515 = vmatpush1.bf16.xpose.msra.mxu0 0
        %516 = vmatprep.subr.bf16.mxu0 0
        %517 = vmatpush1.bf16.xpose.msra.mxu0 0
        %518 = vmatprep.subr.bf16.mxu0 0
        %519 = vmatpush1.bf16.xpose.msra.mxu0 0
        %520 = vmatprep.subr.bf16.mxu0 0
        %521 = vmatpush1.bf16.xpose.msra.mxu0 0
        %522 = vmatprep.subr.bf16.mxu0 0
        %523 = vmatpush1.bf16.xpose.msra.mxu0 0
        %524 = vmatprep.mubr.bf16.mxu0 0
        %525 = vmatmul.mubr.bf16.gmra.mrb[0].mxu0 %v487
        %v526 = vpop.f32.mrb[0].mxu0
        %v527 = vadd.f32 %v368, %v526
        %v528 = vpop.f32.mrb[0].mxu0
        %v529 = vpop.f32.mrb[0].mxu0
        %v530 = vpop.f32.mrb[0].mxu0
        %531 = vdwg.mxu0
        %v532 = vsel %vm420, %v527, -inf
        %533 = vmax.xlane.f32.xlu0 %v532
        %v534 = vpop.xlane.xlu0 %533
        %v535 = vsub.f32 %v527, %v534
        %v536 = vmul.f32 %v535, 1.442695
        %v537 = vpow.pop %v536
        %v538 = vsel %vm420, %v537, 0.0
        %539 = vadd.xlane.f32.xlu0 %v538
        %v540 = vpop.xlane.xlu0 %539
        %v541 = vrcp.pop %v540
        %v542 = vmul.f32 %v537, %v541
        %v543 = vpack.c.bf16 %v542, %v542
        %544 = vrot.lane.b32.xlu0 %v363, 48
        %v545 = vpop.permute.xlu0 %544
        %v547 = vsel %vm420, %v543, 0
        %v550 = vsel %vm438, %v545, 0
        %552 = vmatprep.subr.bf16.mxu0 0
        %553 = vmatpush1.bf16.msra.mxu0 %v550
        %554 = vmatprep.subr.bf16.mxu0 0
        %555 = vmatpush1.bf16.msra.mxu0 0
        %556 = vmatprep.subr.bf16.mxu0 0
        %557 = vmatpush1.bf16.msra.mxu0 0
        %558 = vmatprep.subr.bf16.mxu0 0
        %559 = vmatpush1.bf16.msra.mxu0 0
        %560 = vmatprep.subr.bf16.mxu0 0
        %561 = vmatpush1.bf16.msra.mxu0 0
        %562 = vmatprep.subr.bf16.mxu0 0
        %563 = vmatpush1.bf16.msra.mxu0 0
        %564 = vmatprep.subr.bf16.mxu0 0
        %565 = vmatpush1.bf16.msra.mxu0 0
        %566 = vmatprep.subr.bf16.mxu0 0
        %567 = vmatpush1.bf16.msra.mxu0 0
        %568 = vmatprep.subr.bf16.mxu0 0
        %569 = vmatpush1.bf16.msra.mxu0 0
        %570 = vmatprep.subr.bf16.mxu0 0
        %571 = vmatpush1.bf16.msra.mxu0 0
        %572 = vmatprep.subr.bf16.mxu0 0
        %573 = vmatpush1.bf16.msra.mxu0 0
        %574 = vmatprep.subr.bf16.mxu0 0
        %575 = vmatpush1.bf16.msra.mxu0 0
        %576 = vmatprep.subr.bf16.mxu0 0
        %577 = vmatpush1.bf16.msra.mxu0 0
        %578 = vmatprep.subr.bf16.mxu0 0
        %579 = vmatpush1.bf16.msra.mxu0 0
        %580 = vmatprep.subr.bf16.mxu0 0
        %581 = vmatpush1.bf16.msra.mxu0 0
        %582 = vmatprep.subr.bf16.mxu0 0
        %583 = vmatpush1.bf16.msra.mxu0 0
        %584 = vmatprep.mubr.bf16.mxu0 0
        %585 = vmatmul.mubr.bf16.gmra.mrb[0].mxu0 %v547
        %v586 = vpop.f32.mrb[0].mxu0
        %v587 = vadd.f32 0.0, %v586
        %v588 = vpop.f32.mrb[0].mxu0
        %v589 = vpop.f32.mrb[0].mxu0
        %v590 = vpop.f32.mrb[0].mxu0
        %591 = vdwg.mxu0
        %593 = vrot.lane.b32.xlu0 %v587, 16
        %v594 = vpop.permute.xlu0 %593
        %v596 = vsel %vm373, %v477, %v594
        %v597 = vpack.c.bf16 %v596, %v596
        %v598 = vlaneseq
        %v599 = vshrl.u32 %v598, 7
        %v600 = vsub.s32 1, %v599
        %v601 = vrot.slane %v261, %v600
        %602 = vrot.lane.b32.xlu0 %v316, 32
        %v603 = vpop.permute.xlu0 %602
        %604 = vrot.lane.b32.xlu0 %v317, 32
        %v605 = vpop.permute.xlu0 %604
        %v609 = vsel %vm265, %v597, 0
        %611 = vmatprep.subr.bf16.mxu0 0
        %612 = vmatpush1.bf16.msra.mxu0 %v603
        %613 = vmatprep.subr.bf16.mxu0 0
        %614 = vmatpush1.bf16.msra.mxu0 %v605
        %615 = vmatprep.subr.bf16.mxu0 0
        %616 = vmatpush1.bf16.msra.mxu0 0
        %617 = vmatprep.subr.bf16.mxu0 0
        %618 = vmatpush1.bf16.msra.mxu0 0
        %619 = vmatprep.subr.bf16.mxu0 0
        %620 = vmatpush1.bf16.msra.mxu0 0
        %621 = vmatprep.subr.bf16.mxu0 0
        %622 = vmatpush1.bf16.msra.mxu0 0
        %623 = vmatprep.subr.bf16.mxu0 0
        %624 = vmatpush1.bf16.msra.mxu0 0
        %625 = vmatprep.subr.bf16.mxu0 0
        %626 = vmatpush1.bf16.msra.mxu0 0
        %627 = vmatprep.subr.bf16.mxu0 0
        %628 = vmatpush1.bf16.msra.mxu0 0
        %629 = vmatprep.subr.bf16.mxu0 0
        %630 = vmatpush1.bf16.msra.mxu0 0
        %631 = vmatprep.subr.bf16.mxu0 0
        %632 = vmatpush1.bf16.msra.mxu0 0
        %633 = vmatprep.subr.bf16.mxu0 0
        %634 = vmatpush1.bf16.msra.mxu0 0
        %635 = vmatprep.subr.bf16.mxu0 0
        %636 = vmatpush1.bf16.msra.mxu0 0
        %637 = vmatprep.subr.bf16.mxu0 0
        %638 = vmatpush1.bf16.msra.mxu0 0
        %639 = vmatprep.subr.bf16.mxu0 0
        %640 = vmatpush1.bf16.msra.mxu0 0
        %641 = vmatprep.subr.bf16.mxu0 0
        %642 = vmatpush1.bf16.msra.mxu0 0
        %643 = vmatprep.mubr.bf16.mxu0 0
        %644 = vmatmul.mubr.bf16.gmra.mrb[0].mxu0 %v609
        %v645 = vpop.f32.mrb[0].mxu0
        %v646 = vadd.f32 %v601, %v645
        %v647 = vpop.f32.mrb[0].mxu0
        %v648 = vpop.f32.mrb[0].mxu0
        %v649 = vpop.f32.mrb[0].mxu0
        %650 = vdwg.mxu0
        %v651 = vadd.f32 %v646, %v289
        %v652 = vsel %vm265, %v651, 0.0
        %653 = vadd.xlane.f32.xlu0 %v652
        %v654 = vpop.xlane.xlu0 %653
        %v655 = vmul.f32 %v654, %v269
        %v656 = vsub.f32 %v651, %v655
        %v657 = vmul.f32 %v656, %v656
        %v658 = vsel %vm265, %v657, 0.0
        %659 = vadd.xlane.f32.xlu0 %v658
        %v660 = vpop.xlane.xlu0 %659
        %v661 = vmul.f32 %v660, %v269
        %v662 = vadd.f32 %v661, 1e-12
        %v663 = vrsqrt.pop %v662
        %v664 = vmul.f32 %v656, %v663
        %v665 = vlaneseq
        %v666 = vshrl.u32 %v665, 7
        %v667 = vsub.s32 2, %v666
        %v668 = vrot.slane %v261, %v667
        %v669 = vmul.f32 %v664, %v668
        %v670 = vlaneseq
        %v671 = vshrl.u32 %v670, 7
        %v672 = vsub.s32 3, %v671
        %v673 = vrot.slane %v261, %v672
        %v674 = vadd.f32 %v669, %v673
        %v675 = vpack.c.bf16 %v674, %v674
        %v676 = vlaneseq
        %v677 = vshrl.u32 %v676, 7
        %v678 = vsub.s32 4, %v677
        %v679 = vrot.slane %v261, %v678
        %v680 = vunpack.c.h.b16 %v291
        %v681 = vunpack.c.h.b16 %v292
        %v682 = vunpack.c.h.b16 %v293
        %v683 = vunpack.c.h.b16 %v294
        %v684 = vpack.c.b16 %v681, %v680
        %v685 = vpack.c.b16 %v683, %v682
        %v689 = vsel %vm265, %v675, 0
        %691 = vmatprep.subr.bf16.mxu0 0
        %692 = vmatpush1.bf16.msra.mxu0 %v684
        %693 = vmatprep.subr.bf16.mxu0 0
        %694 = vmatpush1.bf16.msra.mxu0 %v685
        %695 = vmatprep.subr.bf16.mxu0 0
        %696 = vmatpush1.bf16.msra.mxu0 0
        %697 = vmatprep.subr.bf16.mxu0 0
        %698 = vmatpush1.bf16.msra.mxu0 0
        %699 = vmatprep.subr.bf16.mxu0 0
        %700 = vmatpush1.bf16.msra.mxu0 0
        %701 = vmatprep.subr.bf16.mxu0 0
        %702 = vmatpush1.bf16.msra.mxu0 0
        %703 = vmatprep.subr.bf16.mxu0 0
        %704 = vmatpush1.bf16.msra.mxu0 0
        %705 = vmatprep.subr.bf16.mxu0 0
        %706 = vmatpush1.bf16.msra.mxu0 0
        %707 = vmatprep.subr.bf16.mxu0 0
        %708 = vmatpush1.bf16.msra.mxu0 0
        %709 = vmatprep.subr.bf16.mxu0 0
        %710 = vmatpush1.bf16.msra.mxu0 0
        %711 = vmatprep.subr.bf16.mxu0 0
        %712 = vmatpush1.bf16.msra.mxu0 0
        %713 = vmatprep.subr.bf16.mxu0 0
        %714 = vmatpush1.bf16.msra.mxu0 0
        %715 = vmatprep.subr.bf16.mxu0 0
        %716 = vmatpush1.bf16.msra.mxu0 0
        %717 = vmatprep.subr.bf16.mxu0 0
        %718 = vmatpush1.bf16.msra.mxu0 0
        %719 = vmatprep.subr.bf16.mxu0 0
        %720 = vmatpush1.bf16.msra.mxu0 0
        %721 = vmatprep.subr.bf16.mxu0 0
        %722 = vmatpush1.bf16.msra.mxu0 0
        %723 = vmatprep.mubr.bf16.mxu0 0
        %724 = vmatmul.mubr.bf16.gmra.mrb[0].mxu0 %v689
        %v725 = vpop.f32.mrb[0].mxu0
        %v726 = vadd.f32 %v679, %v725
        %v727 = vpop.f32.mrb[0].mxu0
        %v728 = vpop.f32.mrb[0].mxu0
        %v729 = vpop.f32.mrb[0].mxu0
        %730 = vdwg.mxu0
        %v731 = vmul.f32 %v726, %v726
        %v732 = vmul.f32 %v726, %v731
        %v733 = vmul.f32 %v732, 0.044715
        %v734 = vadd.f32 %v726, %v733
        %v735 = vmul.f32 %v734, 0.7978846
        %v736 = vtanh.pop %v735
        %v737 = vadd.f32 %v736, 1.0
        %v738 = vmul.f32 %v737, 0.5
        %v739 = vmul.f32 %v726, %v738
        %v740 = vpack.c.bf16 %v739, %v739
        %v741 = vlaneseq
        %v742 = vshrl.u32 %v741, 7
        %v743 = vsub.s32 5, %v742
        %v744 = vrot.slane %v261, %v743
        %v753 = vunpack.c.l.b16 %v295
        %v754 = vunpack.c.l.b16 %v296
        %v755 = vunpack.c.l.b16 %v297
        %v756 = vunpack.c.l.b16 %v298
        %v757 = vunpack.c.l.b16 %v299
        %v758 = vunpack.c.l.b16 %v300
        %v759 = vunpack.c.l.b16 %v301
        %v760 = vunpack.c.l.b16 %v302
        %v761 = vpack.c.b16 %v754, %v753
        %v762 = vpack.c.b16 %v756, %v755
        %v763 = vpack.c.b16 %v758, %v757
        %v764 = vpack.c.b16 %v760, %v759
        %vm769 = vcmask 523264
        %v771 = vsel %vm769, %v740, 0
        %773 = vmatprep.subr.bf16.mxu0 0
        %774 = vmatpush1.bf16.msra.mxu0 %v761
        %775 = vmatprep.subr.bf16.mxu0 0
        %776 = vmatpush1.bf16.msra.mxu0 %v762
        %777 = vmatprep.subr.bf16.mxu0 0
        %778 = vmatpush1.bf16.msra.mxu0 %v763
        %779 = vmatprep.subr.bf16.mxu0 0
        %780 = vmatpush1.bf16.msra.mxu0 %v764
        %781 = vmatprep.subr.bf16.mxu0 0
        %782 = vmatpush1.bf16.msra.mxu0 0
        %783 = vmatprep.subr.bf16.mxu0 0
        %784 = vmatpush1.bf16.msra.mxu0 0
        %785 = vmatprep.subr.bf16.mxu0 0
        %786 = vmatpush1.bf16.msra.mxu0 0
        %787 = vmatprep.subr.bf16.mxu0 0
        %788 = vmatpush1.bf16.msra.mxu0 0
        %789 = vmatprep.subr.bf16.mxu0 0
        %790 = vmatpush1.bf16.msra.mxu0 0
        %791 = vmatprep.subr.bf16.mxu0 0
        %792 = vmatpush1.bf16.msra.mxu0 0
        %793 = vmatprep.subr.bf16.mxu0 0
        %794 = vmatpush1.bf16.msra.mxu0 0
        %795 = vmatprep.subr.bf16.mxu0 0
        %796 = vmatpush1.bf16.msra.mxu0 0
        %797 = vmatprep.subr.bf16.mxu0 0
        %798 = vmatpush1.bf16.msra.mxu0 0
        %799 = vmatprep.subr.bf16.mxu0 0
        %800 = vmatpush1.bf16.msra.mxu0 0
        %801 = vmatprep.subr.bf16.mxu0 0
        %802 = vmatpush1.bf16.msra.mxu0 0
        %803 = vmatprep.subr.bf16.mxu0 0
        %804 = vmatpush1.bf16.msra.mxu0 0
        %805 = vmatprep.mubr.bf16.mxu0 0
        %806 = vmatmul.mubr.bf16.gmra.mrb[0].mxu0 %v771
        %v807 = vpop.f32.mrb[0].mxu0
        %v808 = vadd.f32 %v744, %v807
        %v809 = vpop.f32.mrb[0].mxu0
        %v810 = vpop.f32.mrb[0].mxu0
        %v811 = vpop.f32.mrb[0].mxu0
        %812 = vdwg.mxu0
        %v813 = vadd.f32 %v808, %v674
        %v814 = vsel %vm265, %v813, 0.0
        %815 = vadd.xlane.f32.xlu0 %v814
        %v816 = vpop.xlane.xlu0 %815
        %v817 = vmul.f32 %v816, %v269
        %v818 = vsub.f32 %v813, %v817
        %v819 = vmul.f32 %v818, %v818
        %v820 = vsel %vm265, %v819, 0.0
        %821 = vadd.xlane.f32.xlu0 %v820
        %v822 = vpop.xlane.xlu0 %821
        %v823 = vmul.f32 %v822, %v269
        %v824 = vadd.f32 %v823, 1e-12
        %v825 = vrsqrt.pop %v824
        %v826 = vmul.f32 %v818, %v825
        %v827 = vlaneseq
        %v828 = vshrl.u32 %v827, 7
        %v829 = vsub.s32 6, %v828
        %v830 = vrot.slane %v261, %v829
        %v831 = vmul.f32 %v826, %v830
        %v832 = vlaneseq
        %v833 = vshrl.u32 %v832, 7
        %v834 = vsub.s32 7, %v833
        %v835 = vrot.slane %v261, %v834
        %v836 = vadd.f32 %v831, %v835
        %s837 = scalar_lea.vmem %s3, 32
        %v838 = vld [vmem:[%s837] sm:$0xff]
        %v839 = vld [vmem:[%s837 + $0x8] sm:$0xff]
        %v840 = vld [vmem:[%s837 + $0x10] sm:$0xff]
        %v841 = vld [vmem:[%s837 + $0x18] sm:$0xff]
        %s842 = scalar_lea.vmem %s4, 32
        %v843 = vld [vmem:[%s842] sm:$0xf]
        %v844 = vld [vmem:[%s842 + $0x4] sm:$0xf]
        %v845 = vld [vmem:[%s842 + $0x8] sm:$0xf]
        %v846 = vld [vmem:[%s842 + $0xc] sm:$0xf]
        %v847 = vld [vmem:[%s842 + $0x10] sm:$0xf]
        %v848 = vld [vmem:[%s842 + $0x14] sm:$0xf]
        %v849 = vld [vmem:[%s842 + $0x18] sm:$0xf]
        %v850 = vld [vmem:[%s842 + $0x1c] sm:$0xf]
        %v851 = vpack.c.bf16 %v836, %v836
        %v852 = vlaneseq
        %v853 = vshrl.u32 %v852, 7
        %v854 = vsub.s32 0, %v853
        %v855 = vrot.slane %v262, %v854
        %v860 = vunpack.c.l.b16 %v838
        %v861 = vunpack.c.l.b16 %v839
        %v862 = vunpack.c.l.b16 %v840
        %v863 = vunpack.c.l.b16 %v841
        %v864 = vpack.c.b16 %v861, %v860
        %v865 = vpack.c.b16 %v863, %v862
        %v869 = vsel %vm265, %v851, 0
        %871 = vmatprep.subr.bf16.mxu0 0
        %872 = vmatpush1.bf16.msra.mxu0 %v864
        %873 = vmatprep.subr.bf16.mxu0 0
        %874 = vmatpush1.bf16.msra.mxu0 %v865
        %875 = vmatprep.subr.bf16.mxu0 0
        %876 = vmatpush1.bf16.msra.mxu0 0
        %877 = vmatprep.subr.bf16.mxu0 0
        %878 = vmatpush1.bf16.msra.mxu0 0
        %879 = vmatprep.subr.bf16.mxu0 0
        %880 = vmatpush1.bf16.msra.mxu0 0
        %881 = vmatprep.subr.bf16.mxu0 0
        %882 = vmatpush1.bf16.msra.mxu0 0
        %883 = vmatprep.subr.bf16.mxu0 0
        %884 = vmatpush1.bf16.msra.mxu0 0
        %885 = vmatprep.subr.bf16.mxu0 0
        %886 = vmatpush1.bf16.msra.mxu0 0
        %887 = vmatprep.subr.bf16.mxu0 0
        %888 = vmatpush1.bf16.msra.mxu0 0
        %889 = vmatprep.subr.bf16.mxu0 0
        %890 = vmatpush1.bf16.msra.mxu0 0
        %891 = vmatprep.subr.bf16.mxu0 0
        %892 = vmatpush1.bf16.msra.mxu0 0
        %893 = vmatprep.subr.bf16.mxu0 0
        %894 = vmatpush1.bf16.msra.mxu0 0
        %895 = vmatprep.subr.bf16.mxu0 0
        %896 = vmatpush1.bf16.msra.mxu0 0
        %897 = vmatprep.subr.bf16.mxu0 0
        %898 = vmatpush1.bf16.msra.mxu0 0
        %899 = vmatprep.subr.bf16.mxu0 0
        %900 = vmatpush1.bf16.msra.mxu0 0
        %901 = vmatprep.subr.bf16.mxu0 0
        %902 = vmatpush1.bf16.msra.mxu0 0
        %903 = vmatprep.mubr.bf16.mxu0 0
        %904 = vmatmul.mubr.bf16.gmra.mrb[0].mxu0 %v869
        %v905 = vpop.f32.mrb[0].mxu0
        %v906 = vadd.f32 %v855, %v905
        %v907 = vpop.f32.mrb[0].mxu0
        %v908 = vpop.f32.mrb[0].mxu0
        %v909 = vpop.f32.mrb[0].mxu0
        %910 = vdwg.mxu0
        %v911 = vpack.c.bf16 %v906, %v906
        %913 = vrot.lane.b32.xlu0 %v911, 96
        %v914 = vpop.permute.xlu0 %913
        %v916 = vsel %vm373, %v911, 0
        %v919 = vsel %vm373, %v914, 0
        %921 = vmatprep.subr.bf16.mxu0 0
        %922 = vmatpush1.bf16.xpose.msra.mxu0 %v919
        %923 = vmatprep.subr.bf16.mxu0 0
        %924 = vmatpush1.bf16.xpose.msra.mxu0 0
        %925 = vmatprep.subr.bf16.mxu0 0
        %926 = vmatpush1.bf16.xpose.msra.mxu0 0
        %927 = vmatprep.subr.bf16.mxu0 0
        %928 = vmatpush1.bf16.xpose.msra.mxu0 0
        %929 = vmatprep.subr.bf16.mxu0 0
        %930 = vmatpush1.bf16.xpose.msra.mxu0 0
        %931 = vmatprep.subr.bf16.mxu0 0
        %932 = vmatpush1.bf16.xpose.msra.mxu0 0
        %933 = vmatprep.subr.bf16.mxu0 0
        %934 = vmatpush1.bf16.xpose.msra.mxu0 0
        %935 = vmatprep.subr.bf16.mxu0 0
        %936 = vmatpush1.bf16.xpose.msra.mxu0 0
        %937 = vmatprep.subr.bf16.mxu0 0
        %938 = vmatpush1.bf16.xpose.msra.mxu0 0
        %939 = vmatprep.subr.bf16.mxu0 0
        %940 = vmatpush1.bf16.xpose.msra.mxu0 0
        %941 = vmatprep.subr.bf16.mxu0 0
        %942 = vmatpush1.bf16.xpose.msra.mxu0 0
        %943 = vmatprep.subr.bf16.mxu0 0
        %944 = vmatpush1.bf16.xpose.msra.mxu0 0
        %945 = vmatprep.subr.bf16.mxu0 0
        %946 = vmatpush1.bf16.xpose.msra.mxu0 0
        %947 = vmatprep.subr.bf16.mxu0 0
        %948 = vmatpush1.bf16.xpose.msra.mxu0 0
        %949 = vmatprep.subr.bf16.mxu0 0
        %950 = vmatpush1.bf16.xpose.msra.mxu0 0
        %951 = vmatprep.subr.bf16.mxu0 0
        %952 = vmatpush1.bf16.xpose.msra.mxu0 0
        %953 = vmatprep.mubr.bf16.mxu0 0
        %954 = vmatmul.mubr.bf16.gmra.mrb[0].mxu0 %v916
        %v955 = vpop.f32.mrb[0].mxu0
        %v956 = vadd.f32 %v368, %v955
        %v957 = vpop.f32.mrb[0].mxu0
        %v958 = vpop.f32.mrb[0].mxu0
        %v959 = vpop.f32.mrb[0].mxu0
        %960 = vdwg.mxu0
        %v961 = vsel %vm420, %v956, -inf
        %962 = vmax.xlane.f32.xlu0 %v961
        %v963 = vpop.xlane.xlu0 %962
        %v964 = vsub.f32 %v956, %v963
        %v965 = vmul.f32 %v964, 1.442695
        %v966 = vpow.pop %v965
        %v967 = vsel %vm420, %v966, 0.0
        %968 = vadd.xlane.f32.xlu0 %v967
        %v969 = vpop.xlane.xlu0 %968
        %v970 = vrcp.pop %v969
        %v971 = vmul.f32 %v966, %v970
        %v972 = vpack.c.bf16 %v971, %v971
        %973 = vrot.lane.b32.xlu0 %v911, 64
        %v974 = vpop.permute.xlu0 %973
        %v976 = vsel %vm420, %v972, 0
        %v979 = vsel %vm438, %v974, 0
        %981 = vmatprep.subr.bf16.mxu0 0
        %982 = vmatpush1.bf16.msra.mxu0 %v979
        %983 = vmatprep.subr.bf16.mxu0 0
        %984 = vmatpush1.bf16.msra.mxu0 0
        %985 = vmatprep.subr.bf16.mxu0 0
        %986 = vmatpush1.bf16.msra.mxu0 0
        %987 = vmatprep.subr.bf16.mxu0 0
        %988 = vmatpush1.bf16.msra.mxu0 0
        %989 = vmatprep.subr.bf16.mxu0 0
        %990 = vmatpush1.bf16.msra.mxu0 0
        %991 = vmatprep.subr.bf16.mxu0 0
        %992 = vmatpush1.bf16.msra.mxu0 0
        %993 = vmatprep.subr.bf16.mxu0 0
        %994 = vmatpush1.bf16.msra.mxu0 0
        %995 = vmatprep.subr.bf16.mxu0 0
        %996 = vmatpush1.bf16.msra.mxu0 0
        %997 = vmatprep.subr.bf16.mxu0 0
        %998 = vmatpush1.bf16.msra.mxu0 0
        %999 = vmatprep.subr.bf16.mxu0 0
        %1000 = vmatpush1.bf16.msra.mxu0 0
        %1001 = vmatprep.subr.bf16.mxu0 0
        %1002 = vmatpush1.bf16.msra.mxu0 0
        %1003 = vmatprep.subr.bf16.mxu0 0
        %1004 = vmatpush1.bf16.msra.mxu0 0
        %1005 = vmatprep.subr.bf16.mxu0 0
        %1006 = vmatpush1.bf16.msra.mxu0 0
        %1007 = vmatprep.subr.bf16.mxu0 0
        %1008 = vmatpush1.bf16.msra.mxu0 0
        %1009 = vmatprep.subr.bf16.mxu0 0
        %1010 = vmatpush1.bf16.msra.mxu0 0
        %1011 = vmatprep.subr.bf16.mxu0 0
        %1012 = vmatpush1.bf16.msra.mxu0 0
        %1013 = vmatprep.mubr.bf16.mxu0 0
        %1014 = vmatmul.mubr.bf16.gmra.mrb[0].mxu0 %v976
        %v1015 = vpop.f32.mrb[0].mxu0
        %v1016 = vadd.f32 0.0, %v1015
        %v1017 = vpop.f32.mrb[0].mxu0
        %v1018 = vpop.f32.mrb[0].mxu0
        %v1019 = vpop.f32.mrb[0].mxu0
        %1020 = vdwg.mxu0
        %1021 = vrot.lane.b32.xlu0 %v911, 112
        %v1022 = vpop.permute.xlu0 %1021
        %1023 = vrot.lane.b32.xlu0 %v911, 80
        %v1024 = vpop.permute.xlu0 %1023
        %v1026 = vsel %vm373, %v1022, 0
        %v1029 = vsel %vm373, %v1024, 0
        %1031 = vmatprep.subr.bf16.mxu0 0
        %1032 = vmatpush1.bf16.xpose.msra.mxu0 %v1029
        %1033 = vmatprep.subr.bf16.mxu0 0
        %1034 = vmatpush1.bf16.xpose.msra.mxu0 0
        %1035 = vmatprep.subr.bf16.mxu0 0
        %1036 = vmatpush1.bf16.xpose.msra.mxu0 0
        %1037 = vmatprep.subr.bf16.mxu0 0
        %1038 = vmatpush1.bf16.xpose.msra.mxu0 0
        %1039 = vmatprep.subr.bf16.mxu0 0
        %1040 = vmatpush1.bf16.xpose.msra.mxu0 0
        %1041 = vmatprep.subr.bf16.mxu0 0
        %1042 = vmatpush1.bf16.xpose.msra.mxu0 0
        %1043 = vmatprep.subr.bf16.mxu0 0
        %1044 = vmatpush1.bf16.xpose.msra.mxu0 0
        %1045 = vmatprep.subr.bf16.mxu0 0
        %1046 = vmatpush1.bf16.xpose.msra.mxu0 0
        %1047 = vmatprep.subr.bf16.mxu0 0
        %1048 = vmatpush1.bf16.xpose.msra.mxu0 0
        %1049 = vmatprep.subr.bf16.mxu0 0
        %1050 = vmatpush1.bf16.xpose.msra.mxu0 0
        %1051 = vmatprep.subr.bf16.mxu0 0
        %1052 = vmatpush1.bf16.xpose.msra.mxu0 0
        %1053 = vmatprep.subr.bf16.mxu0 0
        %1054 = vmatpush1.bf16.xpose.msra.mxu0 0
        %1055 = vmatprep.subr.bf16.mxu0 0
        %1056 = vmatpush1.bf16.xpose.msra.mxu0 0
        %1057 = vmatprep.subr.bf16.mxu0 0
        %1058 = vmatpush1.bf16.xpose.msra.mxu0 0
        %1059 = vmatprep.subr.bf16.mxu0 0
        %1060 = vmatpush1.bf16.xpose.msra.mxu0 0
        %1061 = vmatprep.subr.bf16.mxu0 0
        %1062 = vmatpush1.bf16.xpose.msra.mxu0 0
        %1063 = vmatprep.mubr.bf16.mxu0 0
        %1064 = vmatmul.mubr.bf16.gmra.mrb[0].mxu0 %v1026
        %v1065 = vpop.f32.mrb[0].mxu0
        %v1066 = vadd.f32 %v368, %v1065
        %v1067 = vpop.f32.mrb[0].mxu0
        %v1068 = vpop.f32.mrb[0].mxu0
        %v1069 = vpop.f32.mrb[0].mxu0
        %1070 = vdwg.mxu0
        %v1071 = vsel %vm420, %v1066, -inf
        %1072 = vmax.xlane.f32.xlu0 %v1071
        %v1073 = vpop.xlane.xlu0 %1072
        %v1074 = vsub.f32 %v1066, %v1073
        %v1075 = vmul.f32 %v1074, 1.442695
        %v1076 = vpow.pop %v1075
        %v1077 = vsel %vm420, %v1076, 0.0
        %1078 = vadd.xlane.f32.xlu0 %v1077
        %v1079 = vpop.xlane.xlu0 %1078
        %v1080 = vrcp.pop %v1079
        %v1081 = vmul.f32 %v1076, %v1080
        %v1082 = vpack.c.bf16 %v1081, %v1081
        %1083 = vrot.lane.b32.xlu0 %v911, 48
        %v1084 = vpop.permute.xlu0 %1083
        %v1086 = vsel %vm420, %v1082, 0
        %v1089 = vsel %vm438, %v1084, 0
        %1091 = vmatprep.subr.bf16.mxu0 0
        %1092 = vmatpush1.bf16.msra.mxu0 %v1089
        %1093 = vmatprep.subr.bf16.mxu0 0
        %1094 = vmatpush1.bf16.msra.mxu0 0
        %1095 = vmatprep.subr.bf16.mxu0 0
        %1096 = vmatpush1.bf16.msra.mxu0 0
        %1097 = vmatprep.subr.bf16.mxu0 0
        %1098 = vmatpush1.bf16.msra.mxu0 0
        %1099 = vmatprep.subr.bf16.mxu0 0
        %1100 = vmatpush1.bf16.msra.mxu0 0
        %1101 = vmatprep.subr.bf16.mxu0 0
        %1102 = vmatpush1.bf16.msra.mxu0 0
        %1103 = vmatprep.subr.bf16.mxu0 0
        %1104 = vmatpush1.bf16.msra.mxu0 0
        %1105 = vmatprep.subr.bf16.mxu0 0
        %1106 = vmatpush1.bf16.msra.mxu0 0
        %1107 = vmatprep.subr.bf16.mxu0 0
        %1108 = vmatpush1.bf16.msra.mxu0 0
        %1109 = vmatprep.subr.bf16.mxu0 0
        %1110 = vmatpush1.bf16.msra.mxu0 0
        %1111 = vmatprep.subr.bf16.mxu0 0
        %1112 = vmatpush1.bf16.msra.mxu0 0
        %1113 = vmatprep.subr.bf16.mxu0 0
        %1114 = vmatpush1.bf16.msra.mxu0 0
        %1115 = vmatprep.subr.bf16.mxu0 0
        %1116 = vmatpush1.bf16.msra.mxu0 0
        %1117 = vmatprep.subr.bf16.mxu0 0
        %1118 = vmatpush1.bf16.msra.mxu0 0
        %1119 = vmatprep.subr.bf16.mxu0 0
        %1120 = vmatpush1.bf16.msra.mxu0 0
        %1121 = vmatprep.subr.bf16.mxu0 0
        %1122 = vmatpush1.bf16.msra.mxu0 0
        %1123 = vmatprep.mubr.bf16.mxu0 0
        %1124 = vmatmul.mubr.bf16.gmra.mrb[0].mxu0 %v1086
        %v1125 = vpop.f32.mrb[0].mxu0
        %v1126 = vadd.f32 0.0, %v1125
        %v1127 = vpop.f32.mrb[0].mxu0
        %v1128 = vpop.f32.mrb[0].mxu0
        %v1129 = vpop.f32.mrb[0].mxu0
        %1130 = vdwg.mxu0
        %1132 = vrot.lane.b32.xlu0 %v1126, 16
        %v1133 = vpop.permute.xlu0 %1132
        %v1135 = vsel %vm373, %v1016, %v1133
        %v1136 = vpack.c.bf16 %v1135, %v1135
        %v1137 = vlaneseq
        %v1138 = vshrl.u32 %v1137, 7
        %v1139 = vsub.s32 1, %v1138
        %v1140 = vrot.slane %v262, %v1139
        %1141 = vrot.lane.b32.xlu0 %v864, 32
        %v1142 = vpop.permute.xlu0 %1141
        %1143 = vrot.lane.b32.xlu0 %v865, 32
        %v1144 = vpop.permute.xlu0 %1143
        %v1148 = vsel %vm265, %v1136, 0
        %1150 = vmatprep.subr.bf16.mxu0 0
        %1151 = vmatpush1.bf16.msra.mxu0 %v1142
        %1152 = vmatprep.subr.bf16.mxu0 0
        %1153 = vmatpush1.bf16.msra.mxu0 %v1144
        %1154 = vmatprep.subr.bf16.mxu0 0
        %1155 = vmatpush1.bf16.msra.mxu0 0
        %1156 = vmatprep.subr.bf16.mxu0 0
        %1157 = vmatpush1.bf16.msra.mxu0 0
        %1158 = vmatprep.subr.bf16.mxu0 0
        %1159 = vmatpush1.bf16.msra.mxu0 0
        %1160 = vmatprep.subr.bf16.mxu0 0
        %1161 = vmatpush1.bf16.msra.mxu0 0
        %1162 = vmatprep.subr.bf16.mxu0 0
        %1163 = vmatpush1.bf16.msra.mxu0 0
        %1164 = vmatprep.subr.bf16.mxu0 0
        %1165 = vmatpush1.bf16.msra.mxu0 0
        %1166 = vmatprep.subr.bf16.mxu0 0
        %1167 = vmatpush1.bf16.msra.mxu0 0
        %1168 = vmatprep.subr.bf16.mxu0 0
        %1169 = vmatpush1.bf16.msra.mxu0 0
        %1170 = vmatprep.subr.bf16.mxu0 0
        %1171 = vmatpush1.bf16.msra.mxu0 0
        %1172 = vmatprep.subr.bf16.mxu0 0
        %1173 = vmatpush1.bf16.msra.mxu0 0
        %1174 = vmatprep.subr.bf16.mxu0 0
        %1175 = vmatpush1.bf16.msra.mxu0 0
        %1176 = vmatprep.subr.bf16.mxu0 0
        %1177 = vmatpush1.bf16.msra.mxu0 0
        %1178 = vmatprep.subr.bf16.mxu0 0
        %1179 = vmatpush1.bf16.msra.mxu0 0
        %1180 = vmatprep.subr.bf16.mxu0 0
        %1181 = vmatpush1.bf16.msra.mxu0 0
        %1182 = vmatprep.mubr.bf16.mxu0 0
        %1183 = vmatmul.mubr.bf16.gmra.mrb[0].mxu0 %v1148
        %v1184 = vpop.f32.mrb[0].mxu0
        %v1185 = vadd.f32 %v1140, %v1184
        %v1186 = vpop.f32.mrb[0].mxu0
        %v1187 = vpop.f32.mrb[0].mxu0
        %v1188 = vpop.f32.mrb[0].mxu0
        %1189 = vdwg.mxu0
        %v1190 = vadd.f32 %v1185, %v836
        %v1191 = vsel %vm265, %v1190, 0.0
        %1192 = vadd.xlane.f32.xlu0 %v1191
        %v1193 = vpop.xlane.xlu0 %1192
        %v1194 = vmul.f32 %v1193, %v269
        %v1195 = vsub.f32 %v1190, %v1194
        %v1196 = vmul.f32 %v1195, %v1195
        %v1197 = vsel %vm265, %v1196, 0.0
        %1198 = vadd.xlane.f32.xlu0 %v1197
        %v1199 = vpop.xlane.xlu0 %1198
        %v1200 = vmul.f32 %v1199, %v269
        %v1201 = vadd.f32 %v1200, 1e-12
        %v1202 = vrsqrt.pop %v1201
        %v1203 = vmul.f32 %v1195, %v1202
        %v1204 = vlaneseq
        %v1205 = vshrl.u32 %v1204, 7
        %v1206 = vsub.s32 2, %v1205
        %v1207 = vrot.slane %v262, %v1206
        %v1208 = vmul.f32 %v1203, %v1207
        %v1209 = vlaneseq
        %v1210 = vshrl.u32 %v1209, 7
        %v1211 = vsub.s32 3, %v1210
        %v1212 = vrot.slane %v262, %v1211
        %v1213 = vadd.f32 %v1208, %v1212
        %v1214 = vpack.c.bf16 %v1213, %v1213
        %v1215 = vlaneseq
        %v1216 = vshrl.u32 %v1215, 7
        %v1217 = vsub.s32 4, %v1216
        %v1218 = vrot.slane %v262, %v1217
        %v1219 = vunpack.c.h.b16 %v838
        %v1220 = vunpack.c.h.b16 %v839
        %v1221 = vunpack.c.h.b16 %v840
        %v1222 = vunpack.c.h.b16 %v841
        %v1223 = vpack.c.b16 %v1220, %v1219
        %v1224 = vpack.c.b16 %v1222, %v1221
        %v1228 = vsel %vm265, %v1214, 0
        %1230 = vmatprep.subr.bf16.mxu0 0
        %1231 = vmatpush1.bf16.msra.mxu0 %v1223
        %1232 = vmatprep.subr.bf16.mxu0 0
        %1233 = vmatpush1.bf16.msra.mxu0 %v1224
        %1234 = vmatprep.subr.bf16.mxu0 0
        %1235 = vmatpush1.bf16.msra.mxu0 0
        %1236 = vmatprep.subr.bf16.mxu0 0
        %1237 = vmatpush1.bf16.msra.mxu0 0
        %1238 = vmatprep.subr.bf16.mxu0 0
        %1239 = vmatpush1.bf16.msra.mxu0 0
        %1240 = vmatprep.subr.bf16.mxu0 0
        %1241 = vmatpush1.bf16.msra.mxu0 0
        %1242 = vmatprep.subr.bf16.mxu0 0
        %1243 = vmatpush1.bf16.msra.mxu0 0
        %1244 = vmatprep.subr.bf16.mxu0 0
        %1245 = vmatpush1.bf16.msra.mxu0 0
        %1246 = vmatprep.subr.bf16.mxu0 0
        %1247 = vmatpush1.bf16.msra.mxu0 0
        %1248 = vmatprep.subr.bf16.mxu0 0
        %1249 = vmatpush1.bf16.msra.mxu0 0
        %1250 = vmatprep.subr.bf16.mxu0 0
        %1251 = vmatpush1.bf16.msra.mxu0 0
        %1252 = vmatprep.subr.bf16.mxu0 0
        %1253 = vmatpush1.bf16.msra.mxu0 0
        %1254 = vmatprep.subr.bf16.mxu0 0
        %1255 = vmatpush1.bf16.msra.mxu0 0
        %1256 = vmatprep.subr.bf16.mxu0 0
        %1257 = vmatpush1.bf16.msra.mxu0 0
        %1258 = vmatprep.subr.bf16.mxu0 0
        %1259 = vmatpush1.bf16.msra.mxu0 0
        %1260 = vmatprep.subr.bf16.mxu0 0
        %1261 = vmatpush1.bf16.msra.mxu0 0
        %1262 = vmatprep.mubr.bf16.mxu0 0
        %1263 = vmatmul.mubr.bf16.gmra.mrb[0].mxu0 %v1228
        %v1264 = vpop.f32.mrb[0].mxu0
        %v1265 = vadd.f32 %v1218, %v1264
        %v1266 = vpop.f32.mrb[0].mxu0
        %v1267 = vpop.f32.mrb[0].mxu0
        %v1268 = vpop.f32.mrb[0].mxu0
        %1269 = vdwg.mxu0
        %v1270 = vmul.f32 %v1265, %v1265
        %v1271 = vmul.f32 %v1265, %v1270
        %v1272 = vmul.f32 %v1271, 0.044715
        %v1273 = vadd.f32 %v1265, %v1272
        %v1274 = vmul.f32 %v1273, 0.7978846
        %v1275 = vtanh.pop %v1274
        %v1276 = vadd.f32 %v1275, 1.0
        %v1277 = vmul.f32 %v1276, 0.5
        %v1278 = vmul.f32 %v1265, %v1277
        %v1279 = vpack.c.bf16 %v1278, %v1278
        %v1280 = vlaneseq
        %v1281 = vshrl.u32 %v1280, 7
        %v1282 = vsub.s32 5, %v1281
        %v1283 = vrot.slane %v262, %v1282
        %v1292 = vunpack.c.l.b16 %v843
        %v1293 = vunpack.c.l.b16 %v844
        %v1294 = vunpack.c.l.b16 %v845
        %v1295 = vunpack.c.l.b16 %v846
        %v1296 = vunpack.c.l.b16 %v847
        %v1297 = vunpack.c.l.b16 %v848
        %v1298 = vunpack.c.l.b16 %v849
        %v1299 = vunpack.c.l.b16 %v850
        %v1300 = vpack.c.b16 %v1293, %v1292
        %v1301 = vpack.c.b16 %v1295, %v1294
        %v1302 = vpack.c.b16 %v1297, %v1296
        %v1303 = vpack.c.b16 %v1299, %v1298
        %v1309 = vsel %vm769, %v1279, 0
        %1311 = vmatprep.subr.bf16.mxu0 0
        %1312 = vmatpush1.bf16.msra.mxu0 %v1300
        %1313 = vmatprep.subr.bf16.mxu0 0
        %1314 = vmatpush1.bf16.msra.mxu0 %v1301
        %1315 = vmatprep.subr.bf16.mxu0 0
        %1316 = vmatpush1.bf16.msra.mxu0 %v1302
        %1317 = vmatprep.subr.bf16.mxu0 0
        %1318 = vmatpush1.bf16.msra.mxu0 %v1303
        %1319 = vmatprep.subr.bf16.mxu0 0
        %1320 = vmatpush1.bf16.msra.mxu0 0
        %1321 = vmatprep.subr.bf16.mxu0 0
        %1322 = vmatpush1.bf16.msra.mxu0 0
        %1323 = vmatprep.subr.bf16.mxu0 0
        %1324 = vmatpush1.bf16.msra.mxu0 0
        %1325 = vmatprep.subr.bf16.mxu0 0
        %1326 = vmatpush1.bf16.msra.mxu0 0
        %1327 = vmatprep.subr.bf16.mxu0 0
        %1328 = vmatpush1.bf16.msra.mxu0 0
        %1329 = vmatprep.subr.bf16.mxu0 0
        %1330 = vmatpush1.bf16.msra.mxu0 0
        %1331 = vmatprep.subr.bf16.mxu0 0
        %1332 = vmatpush1.bf16.msra.mxu0 0
        %1333 = vmatprep.subr.bf16.mxu0 0
        %1334 = vmatpush1.bf16.msra.mxu0 0
        %1335 = vmatprep.subr.bf16.mxu0 0
        %1336 = vmatpush1.bf16.msra.mxu0 0
        %1337 = vmatprep.subr.bf16.mxu0 0
        %1338 = vmatpush1.bf16.msra.mxu0 0
        %1339 = vmatprep.subr.bf16.mxu0 0
        %1340 = vmatpush1.bf16.msra.mxu0 0
        %1341 = vmatprep.subr.bf16.mxu0 0
        %1342 = vmatpush1.bf16.msra.mxu0 0
        %1343 = vmatprep.mubr.bf16.mxu0 0
        %1344 = vmatmul.mubr.bf16.gmra.mrb[0].mxu0 %v1309
        %v1345 = vpop.f32.mrb[0].mxu0
        %v1346 = vadd.f32 %v1283, %v1345
        %v1347 = vpop.f32.mrb[0].mxu0
        %v1348 = vpop.f32.mrb[0].mxu0
        %v1349 = vpop.f32.mrb[0].mxu0
        %1350 = vdwg.mxu0
        %v1351 = vadd.f32 %v1346, %v1213
        %v1352 = vsel %vm265, %v1351, 0.0
        %1353 = vadd.xlane.f32.xlu0 %v1352
        %v1354 = vpop.xlane.xlu0 %1353
        %v1355 = vmul.f32 %v1354, %v269
        %v1356 = vsub.f32 %v1351, %v1355
        %v1357 = vmul.f32 %v1356, %v1356
        %v1358 = vsel %vm265, %v1357, 0.0
        %1359 = vadd.xlane.f32.xlu0 %v1358
        %v1360 = vpop.xlane.xlu0 %1359
        %v1361 = vmul.f32 %v1360, %v269
        %v1362 = vadd.f32 %v1361, 1e-12
        %v1363 = vrsqrt.pop %v1362
        %v1364 = vmul.f32 %v1356, %v1363
        %v1365 = vlaneseq
        %v1366 = vshrl.u32 %v1365, 7
        %v1367 = vsub.s32 6, %v1366
        %v1368 = vrot.slane %v262, %v1367
        %v1369 = vmul.f32 %v1364, %v1368
        %v1370 = vlaneseq
        %v1371 = vshrl.u32 %v1370, 7
        %v1372 = vsub.s32 7, %v1371
        %v1373 = vrot.slane %v262, %v1372
        %v1374 = vadd.f32 %v1369, %v1373
        %v1375 = vld [vmem:[%s5] sm:$0xf]
        %v1376 = vld [vmem:[%s5 + $0x4] sm:$0xf]
        %v1377 = vld [vmem:[%s5 + $0x8] sm:$0xf]
        %v1378 = vld [vmem:[%s5 + $0xc] sm:$0xf]
        %v1379 = vpack.c.bf16 %v1374, %v1374
        %v1384 = vunpack.c.l.b16 %v1375
        %v1385 = vunpack.c.l.b16 %v1376
        %v1386 = vunpack.c.l.b16 %v1377
        %v1387 = vunpack.c.l.b16 %v1378
        %v1388 = vpack.c.b16 %v1385, %v1384
        %v1389 = vpack.c.b16 %v1387, %v1386
        %v1393 = vrot.slane %v263, 2
        %v1396 = vsel %vm265, %v1379, 0
        %1398 = vmatprep.subr.bf16.mxu0 0
        %1399 = vmatpush1.bf16.msra.mxu0 %v1388
        %1400 = vmatprep.subr.bf16.mxu0 0
        %1401 = vmatpush1.bf16.msra.mxu0 %v1389
        %1402 = vmatprep.subr.bf16.mxu0 0
        %1403 = vmatpush1.bf16.msra.mxu0 0
        %1404 = vmatprep.subr.bf16.mxu0 0
        %1405 = vmatpush1.bf16.msra.mxu0 0
        %1406 = vmatprep.subr.bf16.mxu0 0
        %1407 = vmatpush1.bf16.msra.mxu0 0
        %1408 = vmatprep.subr.bf16.mxu0 0
        %1409 = vmatpush1.bf16.msra.mxu0 0
        %1410 = vmatprep.subr.bf16.mxu0 0
        %1411 = vmatpush1.bf16.msra.mxu0 0
        %1412 = vmatprep.subr.bf16.mxu0 0
        %1413 = vmatpush1.bf16.msra.mxu0 0
        %1414 = vmatprep.subr.bf16.mxu0 0
        %1415 = vmatpush1.bf16.msra.mxu0 0
        %1416 = vmatprep.subr.bf16.mxu0 0
        %1417 = vmatpush1.bf16.msra.mxu0 0
        %1418 = vmatprep.subr.bf16.mxu0 0
        %1419 = vmatpush1.bf16.msra.mxu0 0
        %1420 = vmatprep.subr.bf16.mxu0 0
        %1421 = vmatpush1.bf16.msra.mxu0 0
        %1422 = vmatprep.subr.bf16.mxu0 0
        %1423 = vmatpush1.bf16.msra.mxu0 0
        %1424 = vmatprep.subr.bf16.mxu0 0
        %1425 = vmatpush1.bf16.msra.mxu0 0
        %1426 = vmatprep.subr.bf16.mxu0 0
        %1427 = vmatpush1.bf16.msra.mxu0 0
        %1428 = vmatprep.subr.bf16.mxu0 0
        %1429 = vmatpush1.bf16.msra.mxu0 0
        %1430 = vmatprep.mubr.bf16.mxu0 0
        %1431 = vmatmul.mubr.bf16.gmra.mrb[0].mxu0 %v1396
        %v1432 = vpop.f32.mrb[0].mxu0
        %v1433 = vadd.f32 %v1393, %v1432
        %v1434 = vpop.f32.mrb[0].mxu0
        %v1435 = vpop.f32.mrb[0].mxu0
        %v1436 = vpop.f32.mrb[0].mxu0
        %1437 = vdwg.mxu0
        %v1438 = vtanh.pop %v1433
        %v1439 = vpack.c.bf16 %v1438, %v1438
        %1440 = vrot.lane.b32.xlu0 %v1388, 96
        %v1441 = vpop.permute.xlu0 %1440
        %1442 = vrot.lane.b32.xlu0 %v1389, 96
        %v1443 = vpop.permute.xlu0 %1442
        %v1446 = vrot.slane %v263, 3
        %v1449 = vsel %vm265, %v1439, 0
        %1451 = vmatprep.subr.bf16.mxu0 0
        %1452 = vmatpush1.bf16.msra.mxu0 %v1441
        %1453 = vmatprep.subr.bf16.mxu0 0
        %1454 = vmatpush1.bf16.msra.mxu0 %v1443
        %1455 = vmatprep.subr.bf16.mxu0 0
        %1456 = vmatpush1.bf16.msra.mxu0 0
        %1457 = vmatprep.subr.bf16.mxu0 0
        %1458 = vmatpush1.bf16.msra.mxu0 0
        %1459 = vmatprep.subr.bf16.mxu0 0
        %1460 = vmatpush1.bf16.msra.mxu0 0
        %1461 = vmatprep.subr.bf16.mxu0 0
        %1462 = vmatpush1.bf16.msra.mxu0 0
        %1463 = vmatprep.subr.bf16.mxu0 0
        %1464 = vmatpush1.bf16.msra.mxu0 0
        %1465 = vmatprep.subr.bf16.mxu0 0
        %1466 = vmatpush1.bf16.msra.mxu0 0
        %1467 = vmatprep.subr.bf16.mxu0 0
        %1468 = vmatpush1.bf16.msra.mxu0 0
        %1469 = vmatprep.subr.bf16.mxu0 0
        %1470 = vmatpush1.bf16.msra.mxu0 0
        %1471 = vmatprep.subr.bf16.mxu0 0
        %1472 = vmatpush1.bf16.msra.mxu0 0
        %1473 = vmatprep.subr.bf16.mxu0 0
        %1474 = vmatpush1.bf16.msra.mxu0 0
        %1475 = vmatprep.subr.bf16.mxu0 0
        %1476 = vmatpush1.bf16.msra.mxu0 0
        %1477 = vmatprep.subr.bf16.mxu0 0
        %1478 = vmatpush1.bf16.msra.mxu0 0
        %1479 = vmatprep.subr.bf16.mxu0 0
        %1480 = vmatpush1.bf16.msra.mxu0 0
        %1481 = vmatprep.subr.bf16.mxu0 0
        %1482 = vmatpush1.bf16.msra.mxu0 0
        %1483 = vmatprep.mubr.bf16.mxu0 0
        %1484 = vmatmul.mubr.bf16.gmra.mrb[0].mxu0 %v1449
        %v1485 = vpop.f32.mrb[0].mxu0
        %v1486 = vadd.f32 %v1446, %v1485
        %v1487 = vpop.f32.mrb[0].mxu0
        %v1488 = vpop.f32.mrb[0].mxu0
        %v1489 = vpop.f32.mrb[0].mxu0
        %1490 = vdwg.mxu0
        %v1491 = vtanh.pop %v1486
        %vm1492 = vcmask 122880
        %1493 = vst.msk [vmem:[%s252] sm:$0x1] %vm1492, %v1491
        %s1494 = sand.u32 %s164, 1
        %s1495 = scalar_lea.sflag [#allocation3], %s1494
        %s1496 = sand.u32 %s164, 1
        %s1497 = scalar_lea.vmem [#allocation2], %s1496
        // Predicated region
        $region45: #{model_forward.1} parent=43 // pred_check
          %p1498 = pneg %p174
        $region46: #{model_forward.1} parent=43 // pred_check_branch
          %1500 = sbr.rel (%p1498) target = $region48
        $region47: #{model_forward.1} parent=43 // pred_region
          %s1502 = ssub.s32 16, 16
          %1503 = vsyncadd %s1495, %s1502
          %s1504 = smul.addr %s20, 16
          %s1505 = scalar_lea.hbm %s6, %s1504
          %s1507 = sshll.u32 %s1497, 4
          %s1508 = int_to_ptr.vmem [resolvable:$true] %s1507
          %1510 = dma.vmem_to_hbm [thread:$0]  %s1508, 16, %s1505, %s1495
        $region48: #{model_forward.1} parent=43 // pred_fallthru
          _
      $region44: #{model_forward.1} parent=5 // pred_fallthru
        _
      %p1511 = scmp.le.s32.totalorder 2, %s15
      // Predicated region
      $region49: #{model_forward.1} parent=5 // pred_check
        %p1512 = pneg %p1511
      $region50: #{model_forward.1} parent=5 // pred_check_branch
        %1514 = sbr.rel (%p1512) target = $region52
      $region51: #{model_forward.1} parent=5 // pred_region
        %s1515 = ssub.s32 %s15, 2
        // Predicated region
        $region53: #{model_forward.1} parent=51 // pred_check
          %p1516 = pneg %p180
        $region54: #{model_forward.1} parent=51 // pred_check_branch
          %1518 = sbr.rel (%p1516) target = $region56
        $region55: #{model_forward.1} parent=51 // pred_region
          %s1519 = sand.u32 %s165, 1
          %s1520 = scalar_lea.sflag [#allocation3], %s1519
          %s1521 = sand.u32 %s165, 1
          %s1522 = scalar_lea.vmem [#allocation2], %s1521
          %1523 = dma.done %s1520, 16
        $region56: #{model_forward.1} parent=51 // pred_fallthru
          _
      $region52: #{model_forward.1} parent=5 // pred_fallthru
        _
    $region6: #{model_forward.1} parent=1 // loop_footer
      %s19 = sadd.s32 1, %s15
    $region7: #{model_forward.1} parent=1 // loop_footer_branch
      %14 = sbr.rel target = $region3
    $region8: #{model_forward.1} parent=1 // loop_exit
      _
    %1524 = vsyncpa [#allocation3], 1
    %s1525 = scalar_lea.sflag [#allocation3], 1
    %1526 = vsyncpa %s1525, 1

</llo_original>
